<compile_context>
chip_gen: v7x
topology: tpu7x:2x2x1
jax: 0.10.0
libtpu: 0.0.40
codegen_flags: <defaults>
</compile_context>

<pallas_src>
import jax
import jax.numpy as jnp
from jax.experimental import pallas as pl
from jax.experimental.pallas import tpu as pltpu


# ----------------------------------------------------------------------------
# Fused kernel: one LSTM direction (selected by pl.program_id(0)) + Linear head
# ----------------------------------------------------------------------------
def _fused_lstm_head_kernel(x_ref, wihT_ref, whhT_ref, b_ref, wlinT_ref,
                            blin_ref, out_ref, gx_scr):
    """
    x_ref:     (T, I)        input sequence, batch row B-1 only
    wihT_ref:  (I, 4H)       input->gate weights, columns ordered [i, f, o | g]
    whhT_ref:  (H, 4H)       hidden->gate weights, same column order
    b_ref:     (1, 4H)       b_ih + b_hh, same column order
    wlinT_ref: (H, out_dim)  this direction's rows of the Linear weight (W^T)
    blin_ref:  (1, out_dim)  Linear bias (added only by direction 0)
    out_ref:   (T, out_dim)  this direction's partial Linear output
    gx_scr:    (T, 4H)       VMEM scratch: hoisted input projection
    """
    d = pl.program_id(0)
    T = x_ref.shape[0]
    H = whhT_ref.shape[0]
    is_fwd = d == 0

    # Hoisted input projection for the whole sequence: one MXU matmul per
    # direction, off the serial recurrence path.
    gx_scr[...] = (
        jnp.dot(x_ref[...], wihT_ref[...], preferred_element_type=jnp.float32)
        + b_ref[...]
    )

    # Hoist the recurrent weight read and the row-id iota (JAX does not CSE
    # broadcast_in_dim, so building it inside the loop would repeat it).
    whhT = whhT_ref[...]
    row_ids = jax.lax.broadcasted_iota(jnp.int32, (T, H), 0)

    def step(s, carry):
        h, c, hist = carry
        # Forward walks t = 0..T-1; backward walks t = T-1..0 and also writes
        # its output at t (matches PyTorch bidirectional LSTM output order).
        t = jnp.where(is_fwd, s, T - 1 - s)
        gx_t = gx_scr[pl.ds(t, 1), :]                              # (1, 4H)
        # TODO(synk): benchmark matmul_push_rhs (weight-resident MXU) or a VPU
        # broadcast-MAC against this per-step jnp.dot from the bundle dump.
        gates = gx_t + jnp.dot(h, whhT, preferred_element_type=jnp.float32)
        # Gate columns are pre-ordered [i, f, o | g]: one sigmoid over 3H
        # lanes + one tanh over H lanes instead of both over all 4H.
        sg = jax.nn.sigmoid(gates[:, :3 * H])                      # (1, 3H)
        g_g = jnp.tanh(gates[:, 3 * H:])                           # (1, H)
        i_g = sg[:, 0 * H:1 * H]
        f_g = sg[:, 1 * H:2 * H]
        o_g = sg[:, 2 * H:3 * H]
        c = f_g * c + i_g * g_g
        h = o_g * jnp.tanh(c)
        # Keep the h history in the loop carry (vregs): one compare+select per
        # step instead of a masked single-sublane VMEM store in the loop.
        hist = jnp.where(row_ids == t, h, hist)
        return (h, c, hist)

    init = (jnp.zeros((1, H), jnp.float32),
            jnp.zeros((1, H), jnp.float32),
            jnp.zeros((T, H), jnp.float32))
    _, _, hist = jax.lax.fori_loop(0, T, step, init, unroll=True)

    # Fused Linear head: this direction's contribution; direction 0 adds bias.
    # (out_dim=4 store is lane-masked; fine at this scale -- keep out_dim a
    # multiple of 128 or move the head to the wrapper if it ever grows.)
    partial = jnp.dot(hist, wlinT_ref[...], preferred_element_type=jnp.float32)

    @pl.when(d == 0)
    def _():
        out_ref[...] = partial + blin_ref[...]

    @pl.when(d != 0)
    def _():
        out_ref[...] = partial


# ----------------------------------------------------------------------------
# Wrapper
# ----------------------------------------------------------------------------
def ball_analyzer_forward(params, x):
    """Pallas forward.  x: (T, B, I) float32 -> (T, output_dim) float32."""
    T, B, I = x.shape
    num_dir, H, _ = params["whhT"].shape
    out_dim = params["blin"].shape[-1]

    # Downstream out[:, -1, :] (last BATCH element under PyTorch's seq-first
    # layout) only consumes batch row B-1, and the LSTM recurrence is
    # independent per batch row, so prune every other row before the kernel.
    # TODO(synk): revisit this pruning (and the out[:, -1, :] interpretation)
    # if out[-1] / batch_first=True was intended in the original module.
    x_last = x[:, B - 1, :]                                       # (T, I)

    partials = pl.pallas_call(
        _fused_lstm_head_kernel,
        out_shape=jax.ShapeDtypeStruct((num_dir, T, out_dim), jnp.float32),
        grid=(num_dir,),
        in_specs=[
            pl.BlockSpec((T, I), lambda d: (0, 0)),                 # shared x row
            pl.BlockSpec((None, I, 4 * H), lambda d: (d, 0, 0)),    # W_ih^T
            pl.BlockSpec((None, H, 4 * H), lambda d: (d, 0, 0)),    # W_hh^T
            pl.BlockSpec((None, 1, 4 * H), lambda d: (d, 0, 0)),    # b_ih + b_hh
            pl.BlockSpec((None, H, out_dim), lambda d: (d, 0, 0)),  # Linear W^T
            pl.BlockSpec((1, out_dim), lambda d: (0, 0)),           # Linear bias
        ],
        out_specs=pl.BlockSpec((None, T, out_dim), lambda d: (d, 0, 0)),
        scratch_shapes=[
            pltpu.VMEM((T, 4 * H), jnp.float32),    # hoisted input projection
        ],
        compiler_params=pltpu.CompilerParams(
            dimension_semantics=("parallel",)),     # fwd/bwd across TCs on v7x
    )(x_last, params["wihT"], params["whhT"], params["b"],
      params["linT"], params["blin"])

    # Sum per-direction partial Linear outputs (bias was added by direction 0).
    # NOTE: on 1-TC chips (v5e/v6e) an accumulating shared output block would
    # save this tiny sum + one grid step, but it would serialize the two
    # directions on v7x's two TensorCores, so keep per-direction partials.
    return jnp.sum(partials, axis=0)


# ----------------------------------------------------------------------------
# Params (PyTorch-style init), stacked per direction, gates ordered [i,f,o,g]
# ----------------------------------------------------------------------------
def _reorder_gates(w4h):
    """PyTorch gate-row order [i, f, g, o] -> kernel order [i, f, o, g]."""
    H = w4h.shape[0] // 4
    return jnp.concatenate([w4h[:2 * H], w4h[3 * H:], w4h[2 * H:3 * H]], axis=0)


def init_params(key, input_dim, hidden_dim, output_dim, n_layers, bidirectional):
    # TODO(synk): n_layers > 1 (and its training-mode inter-layer dropout) is
    # not supported; the original module's Linear input size only matches the
    # LSTM output width when n_layers == 1 anyway.
    assert n_layers == 1
    num_dir = 2 if bidirectional else 1
    H = hidden_dim
    k = 1.0 / (H ** 0.5)

    def uni(key, shape):
        return jax.random.uniform(key, shape, jnp.float32, -k, k)

    wihT, whhT, b = [], [], []
    for _ in range(num_dir):
        key, k1, k2, k3, k4 = jax.random.split(key, 5)
        w_ih = _reorder_gates(uni(k1, (4 * H, input_dim)))   # (4H, I), [i,f,o,g]
        w_hh = _reorder_gates(uni(k2, (4 * H, H)))
        b_ih = _reorder_gates(uni(k3, (4 * H,)))
        b_hh = _reorder_gates(uni(k4, (4 * H,)))
        wihT.append(jnp.transpose(w_ih))                     # (I, 4H)
        whhT.append(jnp.transpose(w_hh))                     # (H, 4H)
        b.append((b_ih + b_hh).reshape(1, 4 * H))            # (1, 4H)

    lin_in = H * num_dir * n_layers
    kl = 1.0 / (lin_in ** 0.5)
    key, k1, k2 = jax.random.split(key, 3)
    w_lin = jax.random.uniform(k1, (output_dim, lin_in), jnp.float32, -kl, kl)
    b_lin = jax.random.uniform(k2, (output_dim,), jnp.float32, -kl, kl)

    return {
        "wihT": jnp.stack(wihT),                               # (D, I, 4H)
        "whhT": jnp.stack(whhT),                               # (D, H, 4H)
        "b": jnp.stack(b),                                     # (D, 1, 4H)
        "linT": jnp.transpose(w_lin).reshape(num_dir, H, output_dim),  # (D,H,out)
        "blin": b_lin.reshape(1, output_dim),                  # (1, out)
    }


# ----------------------------------------------------------------------------
# Pure-JAX reference (correctness check; full batch, gate order [i,f,o,g])
# ----------------------------------------------------------------------------
def _lstm_dir_ref(x, wihT, whhT, b):
    T, B, _ = x.shape
    H = whhT.shape[0]

    def step(carry, xt):
        h, c = carry
        g = xt @ wihT + h @ whhT + b
        i = jax.nn.sigmoid(g[:, 0 * H:1 * H])
        f = jax.nn.sigmoid(g[:, 1 * H:2 * H])
        o = jax.nn.sigmoid(g[:, 2 * H:3 * H])
        gg = jnp.tanh(g[:, 3 * H:4 * H])
        c = f * c + i * gg
        h = o * jnp.tanh(c)
        return (h, c), h

    init = (jnp.zeros((B, H), jnp.float32), jnp.zeros((B, H), jnp.float32))
    _, hs = jax.lax.scan(step, init, x)
    return hs


def ball_analyzer_reference(params, x):
    num_dir, H, _ = params["whhT"].shape
    outs = [_lstm_dir_ref(x, params["wihT"][0], params["whhT"][0], params["b"][0])]
    if num_dir == 2:
        bwd = _lstm_dir_ref(jnp.flip(x, 0), params["wihT"][1],
                            params["whhT"][1], params["b"][1])
        outs.append(jnp.flip(bwd, 0))
    out = jnp.concatenate(outs, axis=-1)          # (T, B, num_dir*H)
    last = out[:, -1, :]                          # last BATCH element, (T, D*H)
    wlinT = params["linT"].reshape(num_dir * H, -1)
    return last @ wlinT + params["blin"]


# ----------------------------------------------------------------------------
if __name__ == "__main__":
    # n_layers=1 is the only setting for which the original PyTorch module's
    # Linear input size matches the LSTM output width.
    input_dim, hidden_dim, output_dim = 16, 32, 4
    n_layers, dropout_rate, bidirectional = 1, 0.0, True
    T, B = 8, 2  # seq_len, batch

    key = jax.random.PRNGKey(0)
    kx, kp = jax.random.split(key)
    x = jax.random.normal(kx, (T, B, input_dim), dtype=jnp.float32)
    params = init_params(kp, input_dim, hidden_dim, output_dim,
                         n_layers, bidirectional)

    fwd = jax.jit(ball_analyzer_forward)
    out = jax.block_until_ready(fwd(params, x))

    ref = ball_analyzer_reference(params, x)
    assert out.shape == (T, output_dim), out.shape
    assert jnp.allclose(out, ref, atol=2e-3, rtol=2e-3), "mismatch vs JAX reference"

    print("KERNEL_OK")
</pallas_src>

<mosaic_0001>
module attributes {stable_mosaic.version = 11 : i64} {
  func.func @_fused_lstm_head_kernel(%arg0: i32, %arg1: memref<8x16xf32, #tpu.memory_space<vmem>>, %arg2: memref<1x16x128xf32, #tpu.memory_space<vmem>>, %arg3: memref<1x32x128xf32, #tpu.memory_space<vmem>>, %arg4: memref<1x1x128xf32, #tpu.memory_space<vmem>>, %arg5: memref<1x32x4xf32, #tpu.memory_space<vmem>>, %arg6: memref<1x4xf32, #tpu.memory_space<vmem>>, %arg7: memref<1x8x4xf32, #tpu.memory_space<vmem>>, %arg8: memref<8x128xf32, #tpu.memory_space<vmem>>) attributes {dimension_semantics = [#tpu.dimension_semantics<parallel>], iteration_bounds = array<i64: 2>, scalar_prefetch = 0 : i64, scratch_operands = 1 : i64, tpu.core_type = #tpu.core_type<tc>, window_params = [{pipeline_mode = #tpu.pipeline_mode<synchronous>, transform_indices = @transform_0, window_bounds = array<i64: 8, 16>}, {transform_indices = @transform_1, window_bounds = array<i64: 1, 16, 128>}, {transform_indices = @transform_2, window_bounds = array<i64: 1, 32, 128>}, {transform_indices = @transform_3, window_bounds = array<i64: 1, 1, 128>}, {transform_indices = @transform_4, window_bounds = array<i64: 1, 32, 4>}, {pipeline_mode = #tpu.pipeline_mode<synchronous>, transform_indices = @transform_5, window_bounds = array<i64: 1, 4>}, {transform_indices = @transform_6, window_bounds = array<i64: 1, 8, 4>}]} {
    %c0_i32 = arith.constant 0 : i32
    %0 = arith.cmpi eq, %arg0, %c0_i32 : i32
    %c0 = arith.constant 0 : index
    %c0_0 = arith.constant 0 : index
    %1 = vector.load %arg1[%c0, %c0_0] : memref<8x16xf32, #tpu.memory_space<vmem>>, vector<8x16xf32>
    %c0_1 = arith.constant 0 : index
    %c0_2 = arith.constant 0 : index
    %c0_3 = arith.constant 0 : index
    %2 = vector.load %arg2[%c0_1, %c0_2, %c0_3] : memref<1x16x128xf32, #tpu.memory_space<vmem>>, vector<1x16x128xf32>
    %3 = vector.shape_cast %2 : vector<1x16x128xf32> to vector<16x128xf32>
    %cst = arith.constant dense<0.000000e+00> : vector<8x128xf32>
    %4 = tpu.matmul %1, %3, %cst {dimension_numbers = #tpu.dot_dimension_numbers<[1], [0], [0], [1], [0, 0, 1, 1], [], []>} : vector<8x16xf32>, vector<16x128xf32>, vector<8x128xf32> -> vector<8x128xf32>
    %c0_4 = arith.constant 0 : index
    %c0_5 = arith.constant 0 : index
    %c0_6 = arith.constant 0 : index
    %5 = vector.load %arg4[%c0_4, %c0_5, %c0_6] : memref<1x1x128xf32, #tpu.memory_space<vmem>>, vector<1x1x128xf32>
    %6 = vector.shape_cast %5 : vector<1x1x128xf32> to vector<1x128xf32>
    %7 = vector.broadcast %6 : vector<1x128xf32> to vector<8x128xf32>
    %8 = arith.addf %4, %7 : vector<8x128xf32>
    %c0_7 = arith.constant 0 : index
    %c0_8 = arith.constant 0 : index
    %9 = vector.load %arg8[%c0_7, %c0_8] : memref<8x128xf32, #tpu.memory_space<vmem>>, vector<8x128xf32>
    tpu.vector_store %arg8[%c0_7, %c0_8], %8 {strides = array<i32>} : memref<8x128xf32, #tpu.memory_space<vmem>>, vector<8x128xf32>,
    %c0_9 = arith.constant 0 : index
    %c0_10 = arith.constant 0 : index
    %c0_11 = arith.constant 0 : index
    %10 = vector.load %arg3[%c0_9, %c0_10, %c0_11] : memref<1x32x128xf32, #tpu.memory_space<vmem>>, vector<1x32x128xf32>
    %11 = vector.shape_cast %10 : vector<1x32x128xf32> to vector<32x128xf32>
    %12 = tpu.iota {dimensions = array<i32: 0>} : vector<8x32xi32>
    %cst_12 = arith.constant 0.000000e+00 : f32
    %13 = vector.broadcast %cst_12 : f32 to vector<1x32xf32>
    %cst_13 = arith.constant 0.000000e+00 : f32
    %14 = vector.broadcast %cst_13 : f32 to vector<1x32xf32>
    %cst_14 = arith.constant 0.000000e+00 : f32
    %15 = vector.broadcast %cst_14 : f32 to vector<8x32xf32>
    %c0_i32_15 = arith.constant 0 : i32
    %c7_i32 = arith.constant 7 : i32
    %16 = arith.subi %c7_i32, %c0_i32_15 : i32
    %17 = arith.select %0, %c0_i32_15, %16 : i32
    %18 = arith.index_cast %17 : i32 to index
    %c0_16 = arith.constant 0 : index
    %19 = vector.load %arg8[%18, %c0_16] : memref<8x128xf32, #tpu.memory_space<vmem>>, vector<1x128xf32>
    %cst_17 = arith.constant dense<0.000000e+00> : vector<1x128xf32>
    %20 = tpu.matmul %13, %11, %cst_17 {dimension_numbers = #tpu.dot_dimension_numbers<[1], [0], [0], [1], [0, 0, 1, 1], [], []>} : vector<1x32xf32>, vector<32x128xf32>, vector<1x128xf32> -> vector<1x128xf32>
    %21 = arith.addf %19, %20 : vector<1x128xf32>
    %22 = vector.extract_strided_slice %21 {offsets = [0, 0], sizes = [1, 96], strides = [1, 1]} : vector<1x128xf32> to vector<1x96xf32>
    %23 = arith.negf %22 : vector<1x96xf32>
    %24 = math.exp %23 : vector<1x96xf32>
    %cst_18 = arith.constant 1.000000e+00 : f32
    %25 = vector.broadcast %cst_18 : f32 to vector<1x96xf32>
    %26 = arith.addf %25, %24 : vector<1x96xf32>
    %27 = arith.divf %25, %26 : vector<1x96xf32>
    %28 = vector.extract_strided_slice %21 {offsets = [0, 96], sizes = [1, 32], strides = [1, 1]} : vector<1x128xf32> to vector<1x32xf32>
    %29 = math.tanh %28 : vector<1x32xf32>
    %30 = vector.extract_strided_slice %27 {offsets = [0, 0], sizes = [1, 32], strides = [1, 1]} : vector<1x96xf32> to vector<1x32xf32>
    %31 = vector.extract_strided_slice %27 {offsets = [0, 32], sizes = [1, 32], strides = [1, 1]} : vector<1x96xf32> to vector<1x32xf32>
    %32 = vector.extract_strided_slice %27 {offsets = [0, 64], sizes = [1, 32], strides = [1, 1]} : vector<1x96xf32> to vector<1x32xf32>
    %33 = arith.mulf %31, %14 : vector<1x32xf32>
    %34 = arith.mulf %30, %29 : vector<1x32xf32>
    %35 = arith.addf %33, %34 : vector<1x32xf32>
    %36 = math.tanh %35 : vector<1x32xf32>
    %37 = arith.mulf %32, %36 : vector<1x32xf32>
    %38 = vector.broadcast %17 : i32 to vector<8x32xi32>
    %39 = arith.cmpi eq, %12, %38 : vector<8x32xi32>
    %40 = vector.shape_cast %37 : vector<1x32xf32> to vector<1x32xf32>
    %41 = vector.broadcast %40 : vector<1x32xf32> to vector<8x32xf32>
    %42 = arith.select %39, %41, %15 : vector<8x32xi1>, vector<8x32xf32>
    %c1_i32 = arith.constant 1 : i32
    %c7_i32_19 = arith.constant 7 : i32
    %43 = arith.subi %c7_i32_19, %c1_i32 : i32
    %44 = arith.select %0, %c1_i32, %43 : i32
    %45 = arith.index_cast %44 : i32 to index
    %c0_20 = arith.constant 0 : index
    %46 = vector.load %arg8[%45, %c0_20] : memref<8x128xf32, #tpu.memory_space<vmem>>, vector<1x128xf32>
    %cst_21 = arith.constant dense<0.000000e+00> : vector<1x128xf32>
    %47 = tpu.matmul %37, %11, %cst_21 {dimension_numbers = #tpu.dot_dimension_numbers<[1], [0], [0], [1], [0, 0, 1, 1], [], []>} : vector<1x32xf32>, vector<32x128xf32>, vector<1x128xf32> -> vector<1x128xf32>
    %48 = arith.addf %46, %47 : vector<1x128xf32>
    %49 = vector.extract_strided_slice %48 {offsets = [0, 0], sizes = [1, 96], strides = [1, 1]} : vector<1x128xf32> to vector<1x96xf32>
    %50 = arith.negf %49 : vector<1x96xf32>
    %51 = math.exp %50 : vector<1x96xf32>
    %cst_22 = arith.constant 1.000000e+00 : f32
    %52 = vector.broadcast %cst_22 : f32 to vector<1x96xf32>
    %53 = arith.addf %52, %51 : vector<1x96xf32>
    %54 = arith.divf %52, %53 : vector<1x96xf32>
    %55 = vector.extract_strided_slice %48 {offsets = [0, 96], sizes = [1, 32], strides = [1, 1]} : vector<1x128xf32> to vector<1x32xf32>
    %56 = math.tanh %55 : vector<1x32xf32>
    %57 = vector.extract_strided_slice %54 {offsets = [0, 0], sizes = [1, 32], strides = [1, 1]} : vector<1x96xf32> to vector<1x32xf32>
    %58 = vector.extract_strided_slice %54 {offsets = [0, 32], sizes = [1, 32], strides = [1, 1]} : vector<1x96xf32> to vector<1x32xf32>
    %59 = vector.extract_strided_slice %54 {offsets = [0, 64], sizes = [1, 32], strides = [1, 1]} : vector<1x96xf32> to vector<1x32xf32>
    %60 = arith.mulf %58, %35 : vector<1x32xf32>
    %61 = arith.mulf %57, %56 : vector<1x32xf32>
    %62 = arith.addf %60, %61 : vector<1x32xf32>
    %63 = math.tanh %62 : vector<1x32xf32>
    %64 = arith.mulf %59, %63 : vector<1x32xf32>
    %65 = vector.broadcast %44 : i32 to vector<8x32xi32>
    %66 = arith.cmpi eq, %12, %65 : vector<8x32xi32>
    %67 = vector.shape_cast %64 : vector<1x32xf32> to vector<1x32xf32>
    %68 = vector.broadcast %67 : vector<1x32xf32> to vector<8x32xf32>
    %69 = arith.select %66, %68, %42 : vector<8x32xi1>, vector<8x32xf32>
    %c2_i32 = arith.constant 2 : i32
    %c7_i32_23 = arith.constant 7 : i32
    %70 = arith.subi %c7_i32_23, %c2_i32 : i32
    %71 = arith.select %0, %c2_i32, %70 : i32
    %72 = arith.index_cast %71 : i32 to index
    %c0_24 = arith.constant 0 : index
    %73 = vector.load %arg8[%72, %c0_24] : memref<8x128xf32, #tpu.memory_space<vmem>>, vector<1x128xf32>
    %cst_25 = arith.constant dense<0.000000e+00> : vector<1x128xf32>
    %74 = tpu.matmul %64, %11, %cst_25 {dimension_numbers = #tpu.dot_dimension_numbers<[1], [0], [0], [1], [0, 0, 1, 1], [], []>} : vector<1x32xf32>, vector<32x128xf32>, vector<1x128xf32> -> vector<1x128xf32>
    %75 = arith.addf %73, %74 : vector<1x128xf32>
    %76 = vector.extract_strided_slice %75 {offsets = [0, 0], sizes = [1, 96], strides = [1, 1]} : vector<1x128xf32> to vector<1x96xf32>
    %77 = arith.negf %76 : vector<1x96xf32>
    %78 = math.exp %77 : vector<1x96xf32>
    %cst_26 = arith.constant 1.000000e+00 : f32
    %79 = vector.broadcast %cst_26 : f32 to vector<1x96xf32>
    %80 = arith.addf %79, %78 : vector<1x96xf32>
    %81 = arith.divf %79, %80 : vector<1x96xf32>
    %82 = vector.extract_strided_slice %75 {offsets = [0, 96], sizes = [1, 32], strides = [1, 1]} : vector<1x128xf32> to vector<1x32xf32>
    %83 = math.tanh %82 : vector<1x32xf32>
    %84 = vector.extract_strided_slice %81 {offsets = [0, 0], sizes = [1, 32], strides = [1, 1]} : vector<1x96xf32> to vector<1x32xf32>
    %85 = vector.extract_strided_slice %81 {offsets = [0, 32], sizes = [1, 32], strides = [1, 1]} : vector<1x96xf32> to vector<1x32xf32>
    %86 = vector.extract_strided_slice %81 {offsets = [0, 64], sizes = [1, 32], strides = [1, 1]} : vector<1x96xf32> to vector<1x32xf32>
    %87 = arith.mulf %85, %62 : vector<1x32xf32>
    %88 = arith.mulf %84, %83 : vector<1x32xf32>
    %89 = arith.addf %87, %88 : vector<1x32xf32>
    %90 = math.tanh %89 : vector<1x32xf32>
    %91 = arith.mulf %86, %90 : vector<1x32xf32>
    %92 = vector.broadcast %71 : i32 to vector<8x32xi32>
    %93 = arith.cmpi eq, %12, %92 : vector<8x32xi32>
    %94 = vector.shape_cast %91 : vector<1x32xf32> to vector<1x32xf32>
    %95 = vector.broadcast %94 : vector<1x32xf32> to vector<8x32xf32>
    %96 = arith.select %93, %95, %69 : vector<8x32xi1>, vector<8x32xf32>
    %c3_i32 = arith.constant 3 : i32
    %c7_i32_27 = arith.constant 7 : i32
    %97 = arith.subi %c7_i32_27, %c3_i32 : i32
    %98 = arith.select %0, %c3_i32, %97 : i32
    %99 = arith.index_cast %98 : i32 to index
    %c0_28 = arith.constant 0 : index
    %100 = vector.load %arg8[%99, %c0_28] : memref<8x128xf32, #tpu.memory_space<vmem>>, vector<1x128xf32>
    %cst_29 = arith.constant dense<0.000000e+00> : vector<1x128xf32>
    %101 = tpu.matmul %91, %11, %cst_29 {dimension_numbers = #tpu.dot_dimension_numbers<[1], [0], [0], [1], [0, 0, 1, 1], [], []>} : vector<1x32xf32>, vector<32x128xf32>, vector<1x128xf32> -> vector<1x128xf32>
    %102 = arith.addf %100, %101 : vector<1x128xf32>
    %103 = vector.extract_strided_slice %102 {offsets = [0, 0], sizes = [1, 96], strides = [1, 1]} : vector<1x128xf32> to vector<1x96xf32>
    %104 = arith.negf %103 : vector<1x96xf32>
    %105 = math.exp %104 : vector<1x96xf32>
    %cst_30 = arith.constant 1.000000e+00 : f32
    %106 = vector.broadcast %cst_30 : f32 to vector<1x96xf32>
    %107 = arith.addf %106, %105 : vector<1x96xf32>
    %108 = arith.divf %106, %107 : vector<1x96xf32>
    %109 = vector.extract_strided_slice %102 {offsets = [0, 96], sizes = [1, 32], strides = [1, 1]} : vector<1x128xf32> to vector<1x32xf32>
    %110 = math.tanh %109 : vector<1x32xf32>
    %111 = vector.extract_strided_slice %108 {offsets = [0, 0], sizes = [1, 32], strides = [1, 1]} : vector<1x96xf32> to vector<1x32xf32>
    %112 = vector.extract_strided_slice %108 {offsets = [0, 32], sizes = [1, 32], strides = [1, 1]} : vector<1x96xf32> to vector<1x32xf32>
    %113 = vector.extract_strided_slice %108 {offsets = [0, 64], sizes = [1, 32], strides = [1, 1]} : vector<1x96xf32> to vector<1x32xf32>
    %114 = arith.mulf %112, %89 : vector<1x32xf32>
    %115 = arith.mulf %111, %110 : vector<1x32xf32>
    %116 = arith.addf %114, %115 : vector<1x32xf32>
    %117 = math.tanh %116 : vector<1x32xf32>
    %118 = arith.mulf %113, %117 : vector<1x32xf32>
    %119 = vector.broadcast %98 : i32 to vector<8x32xi32>
    %120 = arith.cmpi eq, %12, %119 : vector<8x32xi32>
    %121 = vector.shape_cast %118 : vector<1x32xf32> to vector<1x32xf32>
    %122 = vector.broadcast %121 : vector<1x32xf32> to vector<8x32xf32>
    %123 = arith.select %120, %122, %96 : vector<8x32xi1>, vector<8x32xf32>
    %c4_i32 = arith.constant 4 : i32
    %c7_i32_31 = arith.constant 7 : i32
    %124 = arith.subi %c7_i32_31, %c4_i32 : i32
    %125 = arith.select %0, %c4_i32, %124 : i32
    %126 = arith.index_cast %125 : i32 to index
    %c0_32 = arith.constant 0 : index
    %127 = vector.load %arg8[%126, %c0_32] : memref<8x128xf32, #tpu.memory_space<vmem>>, vector<1x128xf32>
    %cst_33 = arith.constant dense<0.000000e+00> : vector<1x128xf32>
    %128 = tpu.matmul %118, %11, %cst_33 {dimension_numbers = #tpu.dot_dimension_numbers<[1], [0], [0], [1], [0, 0, 1, 1], [], []>} : vector<1x32xf32>, vector<32x128xf32>, vector<1x128xf32> -> vector<1x128xf32>
    %129 = arith.addf %127, %128 : vector<1x128xf32>
    %130 = vector.extract_strided_slice %129 {offsets = [0, 0], sizes = [1, 96], strides = [1, 1]} : vector<1x128xf32> to vector<1x96xf32>
    %131 = arith.negf %130 : vector<1x96xf32>
    %132 = math.exp %131 : vector<1x96xf32>
    %cst_34 = arith.constant 1.000000e+00 : f32
    %133 = vector.broadcast %cst_34 : f32 to vector<1x96xf32>
    %134 = arith.addf %133, %132 : vector<1x96xf32>
    %135 = arith.divf %133, %134 : vector<1x96xf32>
    %136 = vector.extract_strided_slice %129 {offsets = [0, 96], sizes = [1, 32], strides = [1, 1]} : vector<1x128xf32> to vector<1x32xf32>
    %137 = math.tanh %136 : vector<1x32xf32>
    %138 = vector.extract_strided_slice %135 {offsets = [0, 0], sizes = [1, 32], strides = [1, 1]} : vector<1x96xf32> to vector<1x32xf32>
    %139 = vector.extract_strided_slice %135 {offsets = [0, 32], sizes = [1, 32], strides = [1, 1]} : vector<1x96xf32> to vector<1x32xf32>
    %140 = vector.extract_strided_slice %135 {offsets = [0, 64], sizes = [1, 32], strides = [1, 1]} : vector<1x96xf32> to vector<1x32xf32>
    %141 = arith.mulf %139, %116 : vector<1x32xf32>
    %142 = arith.mulf %138, %137 : vector<1x32xf32>
    %143 = arith.addf %141, %142 : vector<1x32xf32>
    %144 = math.tanh %143 : vector<1x32xf32>
    %145 = arith.mulf %140, %144 : vector<1x32xf32>
    %146 = vector.broadcast %125 : i32 to vector<8x32xi32>
    %147 = arith.cmpi eq, %12, %146 : vector<8x32xi32>
    %148 = vector.shape_cast %145 : vector<1x32xf32> to vector<1x32xf32>
    %149 = vector.broadcast %148 : vector<1x32xf32> to vector<8x32xf32>
    %150 = arith.select %147, %149, %123 : vector<8x32xi1>, vector<8x32xf32>
    %c5_i32 = arith.constant 5 : i32
    %c7_i32_35 = arith.constant 7 : i32
    %151 = arith.subi %c7_i32_35, %c5_i32 : i32
    %152 = arith.select %0, %c5_i32, %151 : i32
    %153 = arith.index_cast %152 : i32 to index
    %c0_36 = arith.constant 0 : index
    %154 = vector.load %arg8[%153, %c0_36] : memref<8x128xf32, #tpu.memory_space<vmem>>, vector<1x128xf32>
    %cst_37 = arith.constant dense<0.000000e+00> : vector<1x128xf32>
    %155 = tpu.matmul %145, %11, %cst_37 {dimension_numbers = #tpu.dot_dimension_numbers<[1], [0], [0], [1], [0, 0, 1, 1], [], []>} : vector<1x32xf32>, vector<32x128xf32>, vector<1x128xf32> -> vector<1x128xf32>
    %156 = arith.addf %154, %155 : vector<1x128xf32>
    %157 = vector.extract_strided_slice %156 {offsets = [0, 0], sizes = [1, 96], strides = [1, 1]} : vector<1x128xf32> to vector<1x96xf32>
    %158 = arith.negf %157 : vector<1x96xf32>
    %159 = math.exp %158 : vector<1x96xf32>
    %cst_38 = arith.constant 1.000000e+00 : f32
    %160 = vector.broadcast %cst_38 : f32 to vector<1x96xf32>
    %161 = arith.addf %160, %159 : vector<1x96xf32>
    %162 = arith.divf %160, %161 : vector<1x96xf32>
    %163 = vector.extract_strided_slice %156 {offsets = [0, 96], sizes = [1, 32], strides = [1, 1]} : vector<1x128xf32> to vector<1x32xf32>
    %164 = math.tanh %163 : vector<1x32xf32>
    %165 = vector.extract_strided_slice %162 {offsets = [0, 0], sizes = [1, 32], strides = [1, 1]} : vector<1x96xf32> to vector<1x32xf32>
    %166 = vector.extract_strided_slice %162 {offsets = [0, 32], sizes = [1, 32], strides = [1, 1]} : vector<1x96xf32> to vector<1x32xf32>
    %167 = vector.extract_strided_slice %162 {offsets = [0, 64], sizes = [1, 32], strides = [1, 1]} : vector<1x96xf32> to vector<1x32xf32>
    %168 = arith.mulf %166, %143 : vector<1x32xf32>
    %169 = arith.mulf %165, %164 : vector<1x32xf32>
    %170 = arith.addf %168, %169 : vector<1x32xf32>
    %171 = math.tanh %170 : vector<1x32xf32>
    %172 = arith.mulf %167, %171 : vector<1x32xf32>
    %173 = vector.broadcast %152 : i32 to vector<8x32xi32>
    %174 = arith.cmpi eq, %12, %173 : vector<8x32xi32>
    %175 = vector.shape_cast %172 : vector<1x32xf32> to vector<1x32xf32>
    %176 = vector.broadcast %175 : vector<1x32xf32> to vector<8x32xf32>
    %177 = arith.select %174, %176, %150 : vector<8x32xi1>, vector<8x32xf32>
    %c6_i32 = arith.constant 6 : i32
    %c7_i32_39 = arith.constant 7 : i32
    %178 = arith.subi %c7_i32_39, %c6_i32 : i32
    %179 = arith.select %0, %c6_i32, %178 : i32
    %180 = arith.index_cast %179 : i32 to index
    %c0_40 = arith.constant 0 : index
    %181 = vector.load %arg8[%180, %c0_40] : memref<8x128xf32, #tpu.memory_space<vmem>>, vector<1x128xf32>
    %cst_41 = arith.constant dense<0.000000e+00> : vector<1x128xf32>
    %182 = tpu.matmul %172, %11, %cst_41 {dimension_numbers = #tpu.dot_dimension_numbers<[1], [0], [0], [1], [0, 0, 1, 1], [], []>} : vector<1x32xf32>, vector<32x128xf32>, vector<1x128xf32> -> vector<1x128xf32>
    %183 = arith.addf %181, %182 : vector<1x128xf32>
    %184 = vector.extract_strided_slice %183 {offsets = [0, 0], sizes = [1, 96], strides = [1, 1]} : vector<1x128xf32> to vector<1x96xf32>
    %185 = arith.negf %184 : vector<1x96xf32>
    %186 = math.exp %185 : vector<1x96xf32>
    %cst_42 = arith.constant 1.000000e+00 : f32
    %187 = vector.broadcast %cst_42 : f32 to vector<1x96xf32>
    %188 = arith.addf %187, %186 : vector<1x96xf32>
    %189 = arith.divf %187, %188 : vector<1x96xf32>
    %190 = vector.extract_strided_slice %183 {offsets = [0, 96], sizes = [1, 32], strides = [1, 1]} : vector<1x128xf32> to vector<1x32xf32>
    %191 = math.tanh %190 : vector<1x32xf32>
    %192 = vector.extract_strided_slice %189 {offsets = [0, 0], sizes = [1, 32], strides = [1, 1]} : vector<1x96xf32> to vector<1x32xf32>
    %193 = vector.extract_strided_slice %189 {offsets = [0, 32], sizes = [1, 32], strides = [1, 1]} : vector<1x96xf32> to vector<1x32xf32>
    %194 = vector.extract_strided_slice %189 {offsets = [0, 64], sizes = [1, 32], strides = [1, 1]} : vector<1x96xf32> to vector<1x32xf32>
    %195 = arith.mulf %193, %170 : vector<1x32xf32>
    %196 = arith.mulf %192, %191 : vector<1x32xf32>
    %197 = arith.addf %195, %196 : vector<1x32xf32>
    %198 = math.tanh %197 : vector<1x32xf32>
    %199 = arith.mulf %194, %198 : vector<1x32xf32>
    %200 = vector.broadcast %179 : i32 to vector<8x32xi32>
    %201 = arith.cmpi eq, %12, %200 : vector<8x32xi32>
    %202 = vector.shape_cast %199 : vector<1x32xf32> to vector<1x32xf32>
    %203 = vector.broadcast %202 : vector<1x32xf32> to vector<8x32xf32>
    %204 = arith.select %201, %203, %177 : vector<8x32xi1>, vector<8x32xf32>
    %c7_i32_43 = arith.constant 7 : i32
    %c7_i32_44 = arith.constant 7 : i32
    %205 = arith.subi %c7_i32_44, %c7_i32_43 : i32
    %206 = arith.select %0, %c7_i32_43, %205 : i32
    %207 = arith.index_cast %206 : i32 to index
    %c0_45 = arith.constant 0 : index
    %208 = vector.load %arg8[%207, %c0_45] : memref<8x128xf32, #tpu.memory_space<vmem>>, vector<1x128xf32>
    %cst_46 = arith.constant dense<0.000000e+00> : vector<1x128xf32>
    %209 = tpu.matmul %199, %11, %cst_46 {dimension_numbers = #tpu.dot_dimension_numbers<[1], [0], [0], [1], [0, 0, 1, 1], [], []>} : vector<1x32xf32>, vector<32x128xf32>, vector<1x128xf32> -> vector<1x128xf32>
    %210 = arith.addf %208, %209 : vector<1x128xf32>
    %211 = vector.extract_strided_slice %210 {offsets = [0, 0], sizes = [1, 96], strides = [1, 1]} : vector<1x128xf32> to vector<1x96xf32>
    %212 = arith.negf %211 : vector<1x96xf32>
    %213 = math.exp %212 : vector<1x96xf32>
    %cst_47 = arith.constant 1.000000e+00 : f32
    %214 = vector.broadcast %cst_47 : f32 to vector<1x96xf32>
    %215 = arith.addf %214, %213 : vector<1x96xf32>
    %216 = arith.divf %214, %215 : vector<1x96xf32>
    %217 = vector.extract_strided_slice %210 {offsets = [0, 96], sizes = [1, 32], strides = [1, 1]} : vector<1x128xf32> to vector<1x32xf32>
    %218 = math.tanh %217 : vector<1x32xf32>
    %219 = vector.extract_strided_slice %216 {offsets = [0, 0], sizes = [1, 32], strides = [1, 1]} : vector<1x96xf32> to vector<1x32xf32>
    %220 = vector.extract_strided_slice %216 {offsets = [0, 32], sizes = [1, 32], strides = [1, 1]} : vector<1x96xf32> to vector<1x32xf32>
    %221 = vector.extract_strided_slice %216 {offsets = [0, 64], sizes = [1, 32], strides = [1, 1]} : vector<1x96xf32> to vector<1x32xf32>
    %222 = arith.mulf %220, %197 : vector<1x32xf32>
    %223 = arith.mulf %219, %218 : vector<1x32xf32>
    %224 = arith.addf %222, %223 : vector<1x32xf32>
    %225 = math.tanh %224 : vector<1x32xf32>
    %226 = arith.mulf %221, %225 : vector<1x32xf32>
    %227 = vector.broadcast %206 : i32 to vector<8x32xi32>
    %228 = arith.cmpi eq, %12, %227 : vector<8x32xi32>
    %229 = vector.shape_cast %226 : vector<1x32xf32> to vector<1x32xf32>
    %230 = vector.broadcast %229 : vector<1x32xf32> to vector<8x32xf32>
    %231 = arith.select %228, %230, %204 : vector<8x32xi1>, vector<8x32xf32>
    %c8_i32 = arith.constant 8 : i32
    %c0_48 = arith.constant 0 : index
    %c0_49 = arith.constant 0 : index
    %c0_50 = arith.constant 0 : index
    %232 = vector.load %arg5[%c0_48, %c0_49, %c0_50] : memref<1x32x4xf32, #tpu.memory_space<vmem>>, vector<1x32x4xf32>
    %233 = vector.shape_cast %232 : vector<1x32x4xf32> to vector<32x4xf32>
    %cst_51 = arith.constant dense<0.000000e+00> : vector<8x4xf32>
    %234 = tpu.matmul %231, %233, %cst_51 {dimension_numbers = #tpu.dot_dimension_numbers<[1], [0], [0], [1], [0, 0, 1, 1], [], []>} : vector<8x32xf32>, vector<32x4xf32>, vector<8x4xf32> -> vector<8x4xf32>
    %c0_i32_52 = arith.constant 0 : i32
    %235 = arith.cmpi eq, %arg0, %c0_i32_52 : i32
    %236 = arith.extui %235 : i1 to i32
    %c0_i32_53 = arith.constant 0 : i32
    %237 = arith.cmpi ne, %236, %c0_i32_53 : i32
    scf.if %237 {
      %c0_56 = arith.constant 0 : index
      %c0_57 = arith.constant 0 : index
      %241 = vector.load %arg6[%c0_56, %c0_57] : memref<1x4xf32, #tpu.memory_space<vmem>>, vector<1x4xf32>
      %242 = vector.broadcast %241 : vector<1x4xf32> to vector<8x4xf32>
      %243 = arith.addf %234, %242 : vector<8x4xf32>
      %c0_58 = arith.constant 0 : index
      %c0_59 = arith.constant 0 : index
      %c0_60 = arith.constant 0 : index
      %244 = vector.load %arg7[%c0_58, %c0_59, %c0_60] : memref<1x8x4xf32, #tpu.memory_space<vmem>>, vector<1x8x4xf32>
      %245 = vector.shape_cast %244 : vector<1x8x4xf32> to vector<8x4xf32>
      %246 = vector.shape_cast %243 : vector<8x4xf32> to vector<1x8x4xf32>
      tpu.vector_store %arg7[%c0_58, %c0_59, %c0_60], %246 {strides = array<i32>} : memref<1x8x4xf32, #tpu.memory_space<vmem>>, vector<1x8x4xf32>,
    } else {
    }
    %c0_i32_54 = arith.constant 0 : i32
    %238 = arith.cmpi ne, %arg0, %c0_i32_54 : i32
    %239 = arith.extui %238 : i1 to i32
    %c0_i32_55 = arith.constant 0 : i32
    %240 = arith.cmpi ne, %239, %c0_i32_55 : i32
    scf.if %240 {
      %c0_56 = arith.constant 0 : index
      %c0_57 = arith.constant 0 : index
      %c0_58 = arith.constant 0 : index
      %241 = vector.load %arg7[%c0_56, %c0_57, %c0_58] : memref<1x8x4xf32, #tpu.memory_space<vmem>>, vector<1x8x4xf32>
      %242 = vector.shape_cast %241 : vector<1x8x4xf32> to vector<8x4xf32>
      %243 = vector.shape_cast %234 : vector<8x4xf32> to vector<1x8x4xf32>
      tpu.vector_store %arg7[%c0_56, %c0_57, %c0_58], %243 {strides = array<i32>} : memref<1x8x4xf32, #tpu.memory_space<vmem>>, vector<1x8x4xf32>,
    } else {
    }
    return
  }
  func.func @transform_0(%arg0: i32) -> (i32, i32) {
    %c0_i32 = arith.constant 0 : i32
    %c0_i32_0 = arith.constant 0 : i32
    %c0_i32_1 = arith.constant 0 : i32
    return %c0_i32, %c0_i32_0 : i32, i32
  }
  func.func @transform_1(%arg0: i32) -> (i32, i32, i32) {
    %c0_i32 = arith.constant 0 : i32
    %c0_i32_0 = arith.constant 0 : i32
    %c0_i32_1 = arith.constant 0 : i32
    return %arg0, %c0_i32, %c0_i32_0 : i32, i32, i32
  }
  func.func @transform_2(%arg0: i32) -> (i32, i32, i32) {
    %c0_i32 = arith.constant 0 : i32
    %c0_i32_0 = arith.constant 0 : i32
    %c0_i32_1 = arith.constant 0 : i32
    return %arg0, %c0_i32, %c0_i32_0 : i32, i32, i32
  }
  func.func @transform_3(%arg0: i32) -> (i32, i32, i32) {
    %c0_i32 = arith.constant 0 : i32
    %c0_i32_0 = arith.constant 0 : i32
    %c0_i32_1 = arith.constant 0 : i32
    return %arg0, %c0_i32, %c0_i32_0 : i32, i32, i32
  }
  func.func @transform_4(%arg0: i32) -> (i32, i32, i32) {
    %c0_i32 = arith.constant 0 : i32
    %c0_i32_0 = arith.constant 0 : i32
    %c0_i32_1 = arith.constant 0 : i32
    return %arg0, %c0_i32, %c0_i32_0 : i32, i32, i32
  }
  func.func @transform_5(%arg0: i32) -> (i32, i32) {
    %c0_i32 = arith.constant 0 : i32
    %c0_i32_0 = arith.constant 0 : i32
    %c0_i32_1 = arith.constant 0 : i32
    return %c0_i32, %c0_i32_0 : i32, i32
  }
  func.func @transform_6(%arg0: i32) -> (i32, i32, i32) {
    %c0_i32 = arith.constant 0 : i32
    %c0_i32_0 = arith.constant 0 : i32
    %c0_i32_1 = arith.constant 0 : i32
    return %arg0, %c0_i32, %c0_i32_0 : i32, i32, i32
  }
}

</mosaic_0001>

<llo_original>
// kernel: ball_analyzer_forward.1
$region0: #{ball_analyzer_forward.1}
  #allocation0 [shape = 'u32[]', space=smem, size = 0x4, offset = 0x4, fixed_abs, tag = 'smem constant byte address 0x4 - core index']
  #allocation1 [shape = 'u32[144,128]{1,0:T(1,128)}', space=vmem, size = 0x12000, scoped, tag = 'internal scratch']
  #allocation2 [shape = 'f32[8,128]{1,0:T(8,128)}', space=vmem, size = 0x1000, scoped, tag = 'scratch operand']
  %s0 = inlined_call_operand.vmem [shape: f32[8,16], index: 0, kind: input, shape index: {}]
  %s1 = inlined_call_operand.vmem [shape: f32[2,16,128], index: 1, kind: input, shape index: {}]
  %s2 = inlined_call_operand.vmem [shape: f32[2,32,128], index: 2, kind: input, shape index: {}]
  %s3 = inlined_call_operand.vmem [shape: f32[2,1,128], index: 3, kind: input, shape index: {}]
  %s4 = inlined_call_operand.vmem [shape: f32[2,32,4], index: 4, kind: input, shape index: {}]
  %s5 = inlined_call_operand.vmem [shape: f32[1,4], index: 5, kind: input, shape index: {}]
  %s6 = inlined_call_operand.vmem [shape: f32[2,8,4], index: 6, kind: output, shape index: {}]
  %s7 = sld [smem:[#allocation0]]
  $region65: #{ball_analyzer_forward.1} parent=0
    _
  %s9 = ssub.s32 1, %s7
  %s10 = scalar_select 0, %s9, %s7
  loop: start=0, step=1, limit=4
  $region2: #{ball_analyzer_forward.1} parent=0 // loop_pre_header
    _
  $region3: #{ball_analyzer_forward.1} parent=0 // loop_header
    %s12 = sphi 0, %s16
    %p13 = scmp.ge.s32.totalorder %s12, 4
    %s20 = sphi 0, %s20
    %s22 = sphi 0, %s20
    %s23 = sphi 0, %s22
    %s37 = sphi 0, %s23
    %s43 = sphi 0, %s45
    %s46 = sphi 0, %s43
    %s47 = sphi 0, %s46
    %s63 = sphi 0, %s47
    %s69 = sphi 0, %s71
    %s72 = sphi 0, %s69
    %s73 = sphi 0, %s72
    %s89 = sphi 0, %s73
    %s95 = sphi 0, %s97
    %s98 = sphi 0, %s95
    %s99 = sphi 0, %s98
    %s115 = sphi 0, %s99
    %s121 = sphi 0, %s123
    %s124 = sphi 0, %s121
    %s125 = sphi 0, %s124
    %s141 = sphi 0, %s125
    %s145 = sphi 0, %s145
    %s147 = sphi 0, %s145
    %s148 = sphi 0, %s147
    %s162 = sphi 0, %s148
    %s168 = sphi 0, %s170
    %s171 = sphi 0, %s168
    %s172 = sphi 0, %s171
    %s188 = sphi 0, %s172
  $region4: #{ball_analyzer_forward.1} parent=0 // loop_header_branch
    %15 = sbr.rel (%p13) target = $region8
  $region5: #{ball_analyzer_forward.1} parent=0 // loop_body
    %s17 = ssub.s32 %s12, 1
    %s18 = ssub.s32 %s12, 2
    %s19 = sadd.s32 %s12, 1
    %s21 = sadd.s32 %s20, 1
    %p24 = scmp.eq.s32.totalorder %s12, 1
    %p25 = scmp.ne.s32.totalorder %s20, %s22
    %p26 = scmp.eq.s32.totalorder %s12, 0
    %p27 = por %p25, %p26
    %p28 = scmp.ne.s32.totalorder %s20, %s22
    %p29 = scmp.eq.s32.totalorder %s17, 1
    %p30 = por %p28, %p29
    %p31 = scmp.ne.s32.totalorder %s22, %s23
    %p32 = scmp.eq.s32.totalorder %s17, 0
    %p33 = por %p31, %p32
    %p34 = scmp.ne.s32.totalorder %s22, %s23
    %p35 = scmp.eq.s32.totalorder %s18, 1
    %p36 = por %p34, %p35
    %p38 = scmp.ne.s32.totalorder %s23, %s37
    %p39 = scmp.eq.s32.totalorder %s18, 0
    %p40 = por %p38, %p39
    %s41 = ssub.s32 %s12, %s19
    %p42 = scmp.eq.s32.totalorder %s41, 0
    %s44 = sadd.s32 %s43, 1
    %s45 = scalar_select %p42, %s43, %s44
    %p48 = pneg %p42
    %p49 = scmp.eq.s32.totalorder %s12, 1
    %p50 = por %p48, %p49
    %p51 = scmp.ne.s32.totalorder %s43, %s46
    %p52 = scmp.eq.s32.totalorder %s12, 0
    %p53 = por %p51, %p52
    %p54 = scmp.ne.s32.totalorder %s43, %s46
    %p55 = scmp.eq.s32.totalorder %s17, 1
    %p56 = por %p54, %p55
    %p57 = scmp.ne.s32.totalorder %s46, %s47
    %p58 = scmp.eq.s32.totalorder %s17, 0
    %p59 = por %p57, %p58
    %p60 = scmp.ne.s32.totalorder %s46, %s47
    %p61 = scmp.eq.s32.totalorder %s18, 1
    %p62 = por %p60, %p61
    %p64 = scmp.ne.s32.totalorder %s47, %s63
    %p65 = scmp.eq.s32.totalorder %s18, 0
    %p66 = por %p64, %p65
    %s67 = ssub.s32 %s12, %s19
    %p68 = scmp.eq.s32.totalorder %s67, 0
    %s70 = sadd.s32 %s69, 1
    %s71 = scalar_select %p68, %s69, %s70
    %p74 = pneg %p68
    %p75 = scmp.eq.s32.totalorder %s12, 1
    %p76 = por %p74, %p75
    %p77 = scmp.ne.s32.totalorder %s69, %s72
    %p78 = scmp.eq.s32.totalorder %s12, 0
    %p79 = por %p77, %p78
    %p80 = scmp.ne.s32.totalorder %s69, %s72
    %p81 = scmp.eq.s32.totalorder %s17, 1
    %p82 = por %p80, %p81
    %p83 = scmp.ne.s32.totalorder %s72, %s73
    %p84 = scmp.eq.s32.totalorder %s17, 0
    %p85 = por %p83, %p84
    %p86 = scmp.ne.s32.totalorder %s72, %s73
    %p87 = scmp.eq.s32.totalorder %s18, 1
    %p88 = por %p86, %p87
    %p90 = scmp.ne.s32.totalorder %s73, %s89
    %p91 = scmp.eq.s32.totalorder %s18, 0
    %p92 = por %p90, %p91
    %s93 = ssub.s32 %s12, %s19
    %p94 = scmp.eq.s32.totalorder %s93, 0
    %s96 = sadd.s32 %s95, 1
    %s97 = scalar_select %p94, %s95, %s96
    %p100 = pneg %p94
    %p101 = scmp.eq.s32.totalorder %s12, 1
    %p102 = por %p100, %p101
    %p103 = scmp.ne.s32.totalorder %s95, %s98
    %p104 = scmp.eq.s32.totalorder %s12, 0
    %p105 = por %p103, %p104
    %p106 = scmp.ne.s32.totalorder %s95, %s98
    %p107 = scmp.eq.s32.totalorder %s17, 1
    %p108 = por %p106, %p107
    %p109 = scmp.ne.s32.totalorder %s98, %s99
    %p110 = scmp.eq.s32.totalorder %s17, 0
    %p111 = por %p109, %p110
    %p112 = scmp.ne.s32.totalorder %s98, %s99
    %p113 = scmp.eq.s32.totalorder %s18, 1
    %p114 = por %p112, %p113
    %p116 = scmp.ne.s32.totalorder %s99, %s115
    %p117 = scmp.eq.s32.totalorder %s18, 0
    %p118 = por %p116, %p117
    %s119 = ssub.s32 %s12, %s19
    %p120 = scmp.eq.s32.totalorder %s119, 0
    %s122 = sadd.s32 %s121, 1
    %s123 = scalar_select %p120, %s121, %s122
    %p126 = pneg %p120
    %p127 = scmp.eq.s32.totalorder %s12, 1
    %p128 = por %p126, %p127
    %p129 = scmp.ne.s32.totalorder %s121, %s124
    %p130 = scmp.eq.s32.totalorder %s12, 0
    %p131 = por %p129, %p130
    %p132 = scmp.ne.s32.totalorder %s121, %s124
    %p133 = scmp.eq.s32.totalorder %s17, 1
    %p134 = por %p132, %p133
    %p135 = scmp.ne.s32.totalorder %s124, %s125
    %p136 = scmp.eq.s32.totalorder %s17, 0
    %p137 = por %p135, %p136
    %p138 = scmp.ne.s32.totalorder %s124, %s125
    %p139 = scmp.eq.s32.totalorder %s18, 1
    %p140 = por %p138, %p139
    %p142 = scmp.ne.s32.totalorder %s125, %s141
    %p143 = scmp.eq.s32.totalorder %s18, 0
    %p144 = por %p142, %p143
    %s146 = sadd.s32 %s145, 1
    %p149 = scmp.eq.s32.totalorder %s12, 1
    %p150 = scmp.ne.s32.totalorder %s145, %s147
    %p151 = scmp.eq.s32.totalorder %s12, 0
    %p152 = por %p150, %p151
    %p153 = scmp.ne.s32.totalorder %s145, %s147
    %p154 = scmp.eq.s32.totalorder %s17, 1
    %p155 = por %p153, %p154
    %p156 = scmp.ne.s32.totalorder %s147, %s148
    %p157 = scmp.eq.s32.totalorder %s17, 0
    %p158 = por %p156, %p157
    %p159 = scmp.ne.s32.totalorder %s147, %s148
    %p160 = scmp.eq.s32.totalorder %s18, 1
    %p161 = por %p159, %p160
    %p163 = scmp.ne.s32.totalorder %s148, %s162
    %p164 = scmp.eq.s32.totalorder %s18, 0
    %p165 = por %p163, %p164
    %s166 = ssub.s32 %s12, %s19
    %p167 = scmp.eq.s32.totalorder %s166, 0
    %s169 = sadd.s32 %s168, 1
    %s170 = scalar_select %p167, %s168, %s169
    %p173 = pneg %p167
    %p174 = scmp.eq.s32.totalorder %s12, 1
    %p175 = por %p173, %p174
    %p176 = scmp.ne.s32.totalorder %s168, %s171
    %p177 = scmp.eq.s32.totalorder %s12, 0
    %p178 = por %p176, %p177
    %p179 = scmp.ne.s32.totalorder %s168, %s171
    %p180 = scmp.eq.s32.totalorder %s17, 1
    %p181 = por %p179, %p180
    %p182 = scmp.ne.s32.totalorder %s171, %s172
    %p183 = scmp.eq.s32.totalorder %s17, 0
    %p184 = por %p182, %p183
    %p185 = scmp.ne.s32.totalorder %s171, %s172
    %p186 = scmp.eq.s32.totalorder %s18, 1
    %p187 = por %p185, %p186
    %p189 = scmp.ne.s32.totalorder %s172, %s188
    %p190 = scmp.eq.s32.totalorder %s18, 0
    %p191 = por %p189, %p190
    %p192 = scmp.le.s32.totalorder 1, %s12
    %p193 = scmp.lt.s32.totalorder %s12, 3
    %p194 = pnand %p192, %p193
    %p195 = pneg %p194
    // Predicated region
    $region9: #{ball_analyzer_forward.1} parent=5 // pred_check
      _
    $region10: #{ball_analyzer_forward.1} parent=5 // pred_check_branch
      %197 = sbr.rel (%p194) target = $region12
    $region11: #{ball_analyzer_forward.1} parent=5 // pred_region
      %s198 = ssub.s32 %s12, 1
      // Predicated region
      $region13: #{ball_analyzer_forward.1} parent=11 // pred_check
        %p199 = pneg %p33
      $region14: #{ball_analyzer_forward.1} parent=11 // pred_check_branch
        %201 = sbr.rel (%p199) target = $region16
      $region15: #{ball_analyzer_forward.1} parent=11 // pred_region
        _
      $region16: #{ball_analyzer_forward.1} parent=11 // pred_fallthru
        _
      // Predicated region
      $region17: #{ball_analyzer_forward.1} parent=11 // pred_check
        %p202 = pneg %p158
      $region18: #{ball_analyzer_forward.1} parent=11 // pred_check_branch
        %204 = sbr.rel (%p202) target = $region20
      $region19: #{ball_analyzer_forward.1} parent=11 // pred_region
        _
      $region20: #{ball_analyzer_forward.1} parent=11 // pred_fallthru
        _
    $region12: #{ball_analyzer_forward.1} parent=5 // pred_fallthru
      _
    %p205 = scmp.lt.s32.totalorder %s12, 2
    // Predicated region
    $region21: #{ball_analyzer_forward.1} parent=5 // pred_check
      %p206 = pneg %p205
    $region22: #{ball_analyzer_forward.1} parent=5 // pred_check_branch
      %208 = sbr.rel (%p206) target = $region24
    $region23: #{ball_analyzer_forward.1} parent=5 // pred_region
      // Predicated region
      $region25: #{ball_analyzer_forward.1} parent=23 // pred_check
        %p209 = pneg %p53
      $region26: #{ball_analyzer_forward.1} parent=23 // pred_check_branch
        %211 = sbr.rel (%p209) target = $region28
      $region27: #{ball_analyzer_forward.1} parent=23 // pred_region
        %p212 = scmp.lt.s32.totalorder %s12, 1
        %s213 = scalar_select %p212, %s12, 1
        %s214 = smul.addr %s213, 2
        %s215 = smul.addr %s214, 8
        %s216 = scalar_lea.vmem %s1, %s215
      $region28: #{ball_analyzer_forward.1} parent=23 // pred_fallthru
        _
      // Predicated region
      $region29: #{ball_analyzer_forward.1} parent=23 // pred_check
        %p217 = pneg %p79
      $region30: #{ball_analyzer_forward.1} parent=23 // pred_check_branch
        %219 = sbr.rel (%p217) target = $region32
      $region31: #{ball_analyzer_forward.1} parent=23 // pred_region
        %p220 = scmp.lt.s32.totalorder %s12, 1
        %s221 = scalar_select %p220, %s12, 1
        %s222 = smul.addr %s221, 4
        %s223 = smul.addr %s222, 8
        %s224 = scalar_lea.vmem %s2, %s223
      $region32: #{ball_analyzer_forward.1} parent=23 // pred_fallthru
        _
      // Predicated region
      $region33: #{ball_analyzer_forward.1} parent=23 // pred_check
        %p225 = pneg %p105
      $region34: #{ball_analyzer_forward.1} parent=23 // pred_check_branch
        %227 = sbr.rel (%p225) target = $region36
      $region35: #{ball_analyzer_forward.1} parent=23 // pred_region
        %p228 = scmp.lt.s32.totalorder %s12, 1
        %s229 = scalar_select %p228, %s12, 1
        %s230 = scalar_lea.vmem %s3, %s229
      $region36: #{ball_analyzer_forward.1} parent=23 // pred_fallthru
        _
      // Predicated region
      $region37: #{ball_analyzer_forward.1} parent=23 // pred_check
        %p231 = pneg %p131
      $region38: #{ball_analyzer_forward.1} parent=23 // pred_check_branch
        %233 = sbr.rel (%p231) target = $region40
      $region39: #{ball_analyzer_forward.1} parent=23 // pred_region
        %p234 = scmp.lt.s32.totalorder %s12, 1
        %s235 = scalar_select %p234, %s12, 1
        %s236 = smul.addr %s235, 4
        %s237 = smul.addr %s236, 8
        %s238 = scalar_lea.vmem %s4, %s237
      $region40: #{ball_analyzer_forward.1} parent=23 // pred_fallthru
        _
    $region24: #{ball_analyzer_forward.1} parent=5 // pred_fallthru
      _
    %p239 = scmp.le.s32.totalorder 1, %s12
    %p240 = scmp.lt.s32.totalorder %s12, 3
    %p241 = pnand %p239, %p240
    %p242 = pneg %p241
    // Predicated region
    $region41: #{ball_analyzer_forward.1} parent=5 // pred_check
      _
    $region42: #{ball_analyzer_forward.1} parent=5 // pred_check_branch
      %244 = sbr.rel (%p241) target = $region44
    $region43: #{ball_analyzer_forward.1} parent=5 // pred_region
      %s245 = ssub.s32 %s12, 1
      %p246 = pneg %p33
      %p247 = pneg %p30
      %p248 = scmp.lt.s32.totalorder %s17, 1
      %s249 = scalar_select %p248, %s17, 1
      %s250 = smul.addr %s249, 2
      %s251 = smul.addr %s250, 8
      %s252 = scalar_lea.vmem %s1, %s251
      %p253 = pneg %p59
      %p254 = pneg %p56
      %p255 = scmp.lt.s32.totalorder %s17, 1
      %s256 = scalar_select %p255, %s17, 1
      %s257 = smul.addr %s256, 4
      %s258 = smul.addr %s257, 8
      %s259 = scalar_lea.vmem %s2, %s258
      %p260 = pneg %p85
      %p261 = pneg %p82
      %p262 = scmp.lt.s32.totalorder %s17, 1
      %s263 = scalar_select %p262, %s17, 1
      %s264 = scalar_lea.vmem %s3, %s263
      %p265 = pneg %p111
      %p266 = pneg %p108
      %p267 = scmp.lt.s32.totalorder %s17, 1
      %s268 = scalar_select %p267, %s17, 1
      %s269 = smul.addr %s268, 4
      %s270 = smul.addr %s269, 8
      %s271 = scalar_lea.vmem %s4, %s270
      %p272 = pneg %p137
      %p273 = pneg %p134
      %p274 = pneg %p158
      %p275 = pneg %p155
      %p276 = pneg %p184
      %p277 = pneg %p181
      %p278 = scmp.lt.s32.totalorder %s17, 1
      %s279 = scalar_select %p278, %s17, 1
      %s280 = smul.addr %s279, 8
      %s281 = scalar_lea.vmem %s6, %s280
      %p282 = scmp.lt.s32.totalorder %s17, 1
      %s283 = scalar_select %p282, %s17, 1
      %s284 = smul.addr %s283, 2
      %s285 = smul.addr %s284, 8
      %s286 = scalar_lea.vmem %s1, %s285
      %p287 = scmp.lt.s32.totalorder %s17, 1
      %s288 = scalar_select %p287, %s17, 1
      %s289 = smul.addr %s288, 4
      %s290 = smul.addr %s289, 8
      %s291 = scalar_lea.vmem %s2, %s290
      %p292 = scmp.lt.s32.totalorder %s17, 1
      %s293 = scalar_select %p292, %s17, 1
      %s294 = scalar_lea.vmem %s3, %s293
      %p295 = scmp.lt.s32.totalorder %s17, 1
      %s296 = scalar_select %p295, %s17, 1
      %s297 = smul.addr %s296, 4
      %s298 = smul.addr %s297, 8
      %s299 = scalar_lea.vmem %s4, %s298
      %p300 = scmp.lt.s32.totalorder %s17, 1
      %s301 = scalar_select %p300, %s17, 1
      %s302 = smul.addr %s301, 8
      %s303 = scalar_lea.vmem %s6, %s302
      %p304 = scmp.eq.s32.totalorder %s17, 0
      %v305 = vld [vmem:[%s0] sm:$0xff]
      %v306 = vld [vmem:[%s286] sm:$0xff]
      %v307 = vld [vmem:[%s286 + $0x8] sm:$0xff]
      %v308 = vld [vmem:[%s294] sm:$0x1]
      %v310 = vlaneseq
      %v311 = vshrl.u32 %v310, 7
      %v312 = vsub.s32 0, %v311
      %v313 = vrot.slane %v308, %v312
      %vm315 = vcmask 130048
      %v317 = vsel %vm315, %v305, 0
      %319 = vmatprep.subr.mxu0 0.0
      %320 = vmatpush1.msra.mxu0 %v306
      %321 = vmatprep.subr.mxu0 0.0
      %322 = vmatpush1.msra.mxu0 %v307
      %323 = vmatprep.subr.mxu0 0.0
      %324 = vmatpush1.msra.mxu0 0.0
      %325 = vmatprep.subr.mxu0 0.0
      %326 = vmatpush1.msra.mxu0 0.0
      %327 = vmatprep.subr.mxu0 0.0
      %328 = vmatpush1.msra.mxu0 0.0
      %329 = vmatprep.subr.mxu0 0.0
      %330 = vmatpush1.msra.mxu0 0.0
      %331 = vmatprep.subr.mxu0 0.0
      %332 = vmatpush1.msra.mxu0 0.0
      %333 = vmatprep.subr.mxu0 0.0
      %334 = vmatpush1.msra.mxu0 0.0
      %335 = vmatprep.subr.mxu0 0.0
      %336 = vmatpush1.msra.mxu0 0.0
      %337 = vmatprep.subr.mxu0 0.0
      %338 = vmatpush1.msra.mxu0 0.0
      %339 = vmatprep.subr.mxu0 0.0
      %340 = vmatpush1.msra.mxu0 0.0
      %341 = vmatprep.subr.mxu0 0.0
      %342 = vmatpush1.msra.mxu0 0.0
      %343 = vmatprep.subr.mxu0 0.0
      %344 = vmatpush1.msra.mxu0 0.0
      %345 = vmatprep.subr.mxu0 0.0
      %346 = vmatpush1.msra.mxu0 0.0
      %347 = vmatprep.subr.mxu0 0.0
      %348 = vmatpush1.msra.mxu0 0.0
      %349 = vmatprep.subr.mxu0 0.0
      %350 = vmatpush1.msra.mxu0 0.0
      %351 = vmatprep.subr.mxu0 0.0
      %352 = vmatpush1.msra.mxu0 0.0
      %353 = vmatprep.subr.mxu0 0.0
      %354 = vmatpush1.msra.mxu0 0.0
      %355 = vmatprep.subr.mxu0 0.0
      %356 = vmatpush1.msra.mxu0 0.0
      %357 = vmatprep.subr.mxu0 0.0
      %358 = vmatpush1.msra.mxu0 0.0
      %359 = vmatprep.subr.mxu0 0.0
      %360 = vmatpush1.msra.mxu0 0.0
      %361 = vmatprep.subr.mxu0 0.0
      %362 = vmatpush1.msra.mxu0 0.0
      %363 = vmatprep.subr.mxu0 0.0
      %364 = vmatpush1.msra.mxu0 0.0
      %365 = vmatprep.subr.mxu0 0.0
      %366 = vmatpush1.msra.mxu0 0.0
      %367 = vmatprep.subr.mxu0 0.0
      %368 = vmatpush1.msra.mxu0 0.0
      %369 = vmatprep.subr.mxu0 0.0
      %370 = vmatpush1.msra.mxu0 0.0
      %371 = vmatprep.subr.mxu0 0.0
      %372 = vmatpush1.msra.mxu0 0.0
      %373 = vmatprep.subr.mxu0 0.0
      %374 = vmatpush1.msra.mxu0 0.0
      %375 = vmatprep.subr.mxu0 0.0
      %376 = vmatpush1.msra.mxu0 0.0
      %377 = vmatprep.subr.mxu0 0.0
      %378 = vmatpush1.msra.mxu0 0.0
      %379 = vmatprep.subr.mxu0 0.0
      %380 = vmatpush1.msra.mxu0 0.0
      %381 = vmatprep.subr.mxu0 0.0
      %382 = vmatpush1.msra.mxu0 0.0
      %383 = vmatprep.mubr.f32.mxu0 0.0
      %384 = vmatmul.mubr.f32.gmra.mrb[0].mxu0 %v317
      %v385 = vpop.f32.mrb[0].mxu0
      %v386 = vadd.f32 %v313, %v385
      %v387 = vpop.f32.mrb[0].mxu0
      %388 = vdwg.mxu0
      %389 = vst [vmem:[#allocation2] sm:$0xff] %v386
      %v390 = vld [vmem:[%s291] sm:$0xff]
      %v391 = vld [vmem:[%s291 + $0x8] sm:$0xff]
      %v392 = vld [vmem:[%s291 + $0x10] sm:$0xff]
      %v393 = vld [vmem:[%s291 + $0x18] sm:$0xff]
      %v394 = vlaneseq
      %v395 = vshrl.u32 %v394, 7
      %s396 = scalar_select %p304, 0, 7
      %s397 = scalar_lea.vmem [#allocation2], %s396
      %v398 = vld [vmem:[%s397] sm:$0x1]
      %vm399 = vcmask 261120
      %v401 = vsel %vm399, 0.0, 0
      %403 = vmatprep.subr.mxu0 0.0
      %404 = vmatpush1.msra.mxu0 %v390
      %405 = vmatprep.subr.mxu0 0.0
      %406 = vmatpush1.msra.mxu0 %v391
      %407 = vmatprep.subr.mxu0 0.0
      %408 = vmatpush1.msra.mxu0 %v392
      %409 = vmatprep.subr.mxu0 0.0
      %410 = vmatpush1.msra.mxu0 %v393
      %411 = vmatprep.subr.mxu0 0.0
      %412 = vmatpush1.msra.mxu0 0.0
      %413 = vmatprep.subr.mxu0 0.0
      %414 = vmatpush1.msra.mxu0 0.0
      %415 = vmatprep.subr.mxu0 0.0
      %416 = vmatpush1.msra.mxu0 0.0
      %417 = vmatprep.subr.mxu0 0.0
      %418 = vmatpush1.msra.mxu0 0.0
      %419 = vmatprep.subr.mxu0 0.0
      %420 = vmatpush1.msra.mxu0 0.0
      %421 = vmatprep.subr.mxu0 0.0
      %422 = vmatpush1.msra.mxu0 0.0
      %423 = vmatprep.subr.mxu0 0.0
      %424 = vmatpush1.msra.mxu0 0.0
      %425 = vmatprep.subr.mxu0 0.0
      %426 = vmatpush1.msra.mxu0 0.0
      %427 = vmatprep.subr.mxu0 0.0
      %428 = vmatpush1.msra.mxu0 0.0
      %429 = vmatprep.subr.mxu0 0.0
      %430 = vmatpush1.msra.mxu0 0.0
      %431 = vmatprep.subr.mxu0 0.0
      %432 = vmatpush1.msra.mxu0 0.0
      %433 = vmatprep.subr.mxu0 0.0
      %434 = vmatpush1.msra.mxu0 0.0
      %435 = vmatprep.subr.mxu0 0.0
      %436 = vmatpush1.msra.mxu0 0.0
      %437 = vmatprep.subr.mxu0 0.0
      %438 = vmatpush1.msra.mxu0 0.0
      %439 = vmatprep.subr.mxu0 0.0
      %440 = vmatpush1.msra.mxu0 0.0
      %441 = vmatprep.subr.mxu0 0.0
      %442 = vmatpush1.msra.mxu0 0.0
      %443 = vmatprep.subr.mxu0 0.0
      %444 = vmatpush1.msra.mxu0 0.0
      %445 = vmatprep.subr.mxu0 0.0
      %446 = vmatpush1.msra.mxu0 0.0
      %447 = vmatprep.subr.mxu0 0.0
      %448 = vmatpush1.msra.mxu0 0.0
      %449 = vmatprep.subr.mxu0 0.0
      %450 = vmatpush1.msra.mxu0 0.0
      %451 = vmatprep.subr.mxu0 0.0
      %452 = vmatpush1.msra.mxu0 0.0
      %453 = vmatprep.subr.mxu0 0.0
      %454 = vmatpush1.msra.mxu0 0.0
      %455 = vmatprep.subr.mxu0 0.0
      %456 = vmatpush1.msra.mxu0 0.0
      %457 = vmatprep.subr.mxu0 0.0
      %458 = vmatpush1.msra.mxu0 0.0
      %459 = vmatprep.subr.mxu0 0.0
      %460 = vmatpush1.msra.mxu0 0.0
      %461 = vmatprep.subr.mxu0 0.0
      %462 = vmatpush1.msra.mxu0 0.0
      %463 = vmatprep.subr.mxu0 0.0
      %464 = vmatpush1.msra.mxu0 0.0
      %465 = vmatprep.subr.mxu0 0.0
      %466 = vmatpush1.msra.mxu0 0.0
      %467 = vmatprep.mubr.f32.mxu0 0.0
      %468 = vmatmul.mubr.f32.gmra.mrb[0].mxu0 %v401
      %v469 = vpop.f32.mrb[0].mxu0
      %v470 = vadd.f32 0.0, %v469
      %v471 = vpop.f32.mrb[0].mxu0
      %472 = vdwg.mxu0
      %v473 = vadd.f32 %v398, %v470
      %v474 = vxor.u32 %v473, 2147483648
      %v475 = vmul.f32 %v474, 1.442695
      %v476 = vpow.pop %v475
      %v477 = vadd.f32 %v476, 1.0
      %v478 = vrcp.pop %v477
      %v479 = vmul.f32 1.0, %v478
      %v480 = vtanh.pop %v473
      %v481 = vmul.f32 %v479, 0.0
      %483 = vrot.lane.b32.xlu0 %v480, 32
      %v484 = vpop.permute.xlu0 %483
      %v486 = vmul.f32 %v479, %v484
      %488 = vrot.lane.b32.xlu0 %v486, 32
      %v489 = vpop.permute.xlu0 %488
      %v491 = vadd.f32 %v481, %v489
      %v492 = vtanh.pop %v491
      %494 = vrot.lane.b32.xlu0 %v492, 32
      %v495 = vpop.permute.xlu0 %494
      %v497 = vmul.f32 %v479, %v495
      %v498 = vstv %s396
      %vm499 = vcmp.eq.s32.totalorder %v395, %v498
      %v500 = vlaneseq
      %v501 = vshrl.u32 %v500, 7
      %v502 = vsub.s32 0, %v501
      %v503 = vrot.slane %v497, %v502
      %v504 = vsel %vm499, %v503, 0.0
      %s505 = scalar_select %p304, 1, 6
      %s506 = scalar_lea.vmem [#allocation2], %s505
      %v507 = vld [vmem:[%s506] sm:$0x1]
      %509 = vrot.lane.b32.xlu0 %v497, 64
      %v510 = vpop.permute.xlu0 %509
      %v511 = vsel %vm399, %v510, 0
      %513 = vmatprep.subr.mxu0 0.0
      %514 = vmatpush1.msra.mxu0 %v390
      %515 = vmatprep.subr.mxu0 0.0
      %516 = vmatpush1.msra.mxu0 %v391
      %517 = vmatprep.subr.mxu0 0.0
      %518 = vmatpush1.msra.mxu0 %v392
      %519 = vmatprep.subr.mxu0 0.0
      %520 = vmatpush1.msra.mxu0 %v393
      %521 = vmatprep.subr.mxu0 0.0
      %522 = vmatpush1.msra.mxu0 0.0
      %523 = vmatprep.subr.mxu0 0.0
      %524 = vmatpush1.msra.mxu0 0.0
      %525 = vmatprep.subr.mxu0 0.0
      %526 = vmatpush1.msra.mxu0 0.0
      %527 = vmatprep.subr.mxu0 0.0
      %528 = vmatpush1.msra.mxu0 0.0
      %529 = vmatprep.subr.mxu0 0.0
      %530 = vmatpush1.msra.mxu0 0.0
      %531 = vmatprep.subr.mxu0 0.0
      %532 = vmatpush1.msra.mxu0 0.0
      %533 = vmatprep.subr.mxu0 0.0
      %534 = vmatpush1.msra.mxu0 0.0
      %535 = vmatprep.subr.mxu0 0.0
      %536 = vmatpush1.msra.mxu0 0.0
      %537 = vmatprep.subr.mxu0 0.0
      %538 = vmatpush1.msra.mxu0 0.0
      %539 = vmatprep.subr.mxu0 0.0
      %540 = vmatpush1.msra.mxu0 0.0
      %541 = vmatprep.subr.mxu0 0.0
      %542 = vmatpush1.msra.mxu0 0.0
      %543 = vmatprep.subr.mxu0 0.0
      %544 = vmatpush1.msra.mxu0 0.0
      %545 = vmatprep.subr.mxu0 0.0
      %546 = vmatpush1.msra.mxu0 0.0
      %547 = vmatprep.subr.mxu0 0.0
      %548 = vmatpush1.msra.mxu0 0.0
      %549 = vmatprep.subr.mxu0 0.0
      %550 = vmatpush1.msra.mxu0 0.0
      %551 = vmatprep.subr.mxu0 0.0
      %552 = vmatpush1.msra.mxu0 0.0
      %553 = vmatprep.subr.mxu0 0.0
      %554 = vmatpush1.msra.mxu0 0.0
      %555 = vmatprep.subr.mxu0 0.0
      %556 = vmatpush1.msra.mxu0 0.0
      %557 = vmatprep.subr.mxu0 0.0
      %558 = vmatpush1.msra.mxu0 0.0
      %559 = vmatprep.subr.mxu0 0.0
      %560 = vmatpush1.msra.mxu0 0.0
      %561 = vmatprep.subr.mxu0 0.0
      %562 = vmatpush1.msra.mxu0 0.0
      %563 = vmatprep.subr.mxu0 0.0
      %564 = vmatpush1.msra.mxu0 0.0
      %565 = vmatprep.subr.mxu0 0.0
      %566 = vmatpush1.msra.mxu0 0.0
      %567 = vmatprep.subr.mxu0 0.0
      %568 = vmatpush1.msra.mxu0 0.0
      %569 = vmatprep.subr.mxu0 0.0
      %570 = vmatpush1.msra.mxu0 0.0
      %571 = vmatprep.subr.mxu0 0.0
      %572 = vmatpush1.msra.mxu0 0.0
      %573 = vmatprep.subr.mxu0 0.0
      %574 = vmatpush1.msra.mxu0 0.0
      %575 = vmatprep.subr.mxu0 0.0
      %576 = vmatpush1.msra.mxu0 0.0
      %577 = vmatprep.mubr.f32.mxu0 0.0
      %578 = vmatmul.mubr.f32.gmra.mrb[0].mxu0 %v511
      %v579 = vpop.f32.mrb[0].mxu0
      %v580 = vadd.f32 0.0, %v579
      %v581 = vpop.f32.mrb[0].mxu0
      %582 = vdwg.mxu0
      %v583 = vadd.f32 %v507, %v580
      %v584 = vxor.u32 %v583, 2147483648
      %v585 = vmul.f32 %v584, 1.442695
      %v586 = vpow.pop %v585
      %v587 = vadd.f32 %v586, 1.0
      %v588 = vrcp.pop %v587
      %v589 = vmul.f32 1.0, %v588
      %v590 = vtanh.pop %v583
      %v591 = vmul.f32 %v589, %v491
      %593 = vrot.lane.b32.xlu0 %v590, 32
      %v594 = vpop.permute.xlu0 %593
      %v596 = vmul.f32 %v589, %v594
      %598 = vrot.lane.b32.xlu0 %v596, 32
      %v599 = vpop.permute.xlu0 %598
      %v601 = vadd.f32 %v591, %v599
      %v602 = vtanh.pop %v601
      %604 = vrot.lane.b32.xlu0 %v602, 32
      %v605 = vpop.permute.xlu0 %604
      %v607 = vmul.f32 %v589, %v605
      %v608 = vstv %s505
      %vm609 = vcmp.eq.s32.totalorder %v395, %v608
      %v610 = vlaneseq
      %v611 = vshrl.u32 %v610, 7
      %v612 = vsub.s32 0, %v611
      %v613 = vrot.slane %v607, %v612
      %v614 = vsel %vm609, %v613, %v504
      %s615 = scalar_select %p304, 2, 5
      %s616 = scalar_lea.vmem [#allocation2], %s615
      %v617 = vld [vmem:[%s616] sm:$0x1]
      %619 = vrot.lane.b32.xlu0 %v607, 64
      %v620 = vpop.permute.xlu0 %619
      %v621 = vsel %vm399, %v620, 0
      %623 = vmatprep.subr.mxu0 0.0
      %624 = vmatpush1.msra.mxu0 %v390
      %625 = vmatprep.subr.mxu0 0.0
      %626 = vmatpush1.msra.mxu0 %v391
      %627 = vmatprep.subr.mxu0 0.0
      %628 = vmatpush1.msra.mxu0 %v392
      %629 = vmatprep.subr.mxu0 0.0
      %630 = vmatpush1.msra.mxu0 %v393
      %631 = vmatprep.subr.mxu0 0.0
      %632 = vmatpush1.msra.mxu0 0.0
      %633 = vmatprep.subr.mxu0 0.0
      %634 = vmatpush1.msra.mxu0 0.0
      %635 = vmatprep.subr.mxu0 0.0
      %636 = vmatpush1.msra.mxu0 0.0
      %637 = vmatprep.subr.mxu0 0.0
      %638 = vmatpush1.msra.mxu0 0.0
      %639 = vmatprep.subr.mxu0 0.0
      %640 = vmatpush1.msra.mxu0 0.0
      %641 = vmatprep.subr.mxu0 0.0
      %642 = vmatpush1.msra.mxu0 0.0
      %643 = vmatprep.subr.mxu0 0.0
      %644 = vmatpush1.msra.mxu0 0.0
      %645 = vmatprep.subr.mxu0 0.0
      %646 = vmatpush1.msra.mxu0 0.0
      %647 = vmatprep.subr.mxu0 0.0
      %648 = vmatpush1.msra.mxu0 0.0
      %649 = vmatprep.subr.mxu0 0.0
      %650 = vmatpush1.msra.mxu0 0.0
      %651 = vmatprep.subr.mxu0 0.0
      %652 = vmatpush1.msra.mxu0 0.0
      %653 = vmatprep.subr.mxu0 0.0
      %654 = vmatpush1.msra.mxu0 0.0
      %655 = vmatprep.subr.mxu0 0.0
      %656 = vmatpush1.msra.mxu0 0.0
      %657 = vmatprep.subr.mxu0 0.0
      %658 = vmatpush1.msra.mxu0 0.0
      %659 = vmatprep.subr.mxu0 0.0
      %660 = vmatpush1.msra.mxu0 0.0
      %661 = vmatprep.subr.mxu0 0.0
      %662 = vmatpush1.msra.mxu0 0.0
      %663 = vmatprep.subr.mxu0 0.0
      %664 = vmatpush1.msra.mxu0 0.0
      %665 = vmatprep.subr.mxu0 0.0
      %666 = vmatpush1.msra.mxu0 0.0
      %667 = vmatprep.subr.mxu0 0.0
      %668 = vmatpush1.msra.mxu0 0.0
      %669 = vmatprep.subr.mxu0 0.0
      %670 = vmatpush1.msra.mxu0 0.0
      %671 = vmatprep.subr.mxu0 0.0
      %672 = vmatpush1.msra.mxu0 0.0
      %673 = vmatprep.subr.mxu0 0.0
      %674 = vmatpush1.msra.mxu0 0.0
      %675 = vmatprep.subr.mxu0 0.0
      %676 = vmatpush1.msra.mxu0 0.0
      %677 = vmatprep.subr.mxu0 0.0
      %678 = vmatpush1.msra.mxu0 0.0
      %679 = vmatprep.subr.mxu0 0.0
      %680 = vmatpush1.msra.mxu0 0.0
      %681 = vmatprep.subr.mxu0 0.0
      %682 = vmatpush1.msra.mxu0 0.0
      %683 = vmatprep.subr.mxu0 0.0
      %684 = vmatpush1.msra.mxu0 0.0
      %685 = vmatprep.subr.mxu0 0.0
      %686 = vmatpush1.msra.mxu0 0.0
      %687 = vmatprep.mubr.f32.mxu0 0.0
      %688 = vmatmul.mubr.f32.gmra.mrb[0].mxu0 %v621
      %v689 = vpop.f32.mrb[0].mxu0
      %v690 = vadd.f32 0.0, %v689
      %v691 = vpop.f32.mrb[0].mxu0
      %692 = vdwg.mxu0
      %v693 = vadd.f32 %v617, %v690
      %v694 = vxor.u32 %v693, 2147483648
      %v695 = vmul.f32 %v694, 1.442695
      %v696 = vpow.pop %v695
      %v697 = vadd.f32 %v696, 1.0
      %v698 = vrcp.pop %v697
      %v699 = vmul.f32 1.0, %v698
      %v700 = vtanh.pop %v693
      %v701 = vmul.f32 %v699, %v601
      %703 = vrot.lane.b32.xlu0 %v700, 32
      %v704 = vpop.permute.xlu0 %703
      %v706 = vmul.f32 %v699, %v704
      %708 = vrot.lane.b32.xlu0 %v706, 32
      %v709 = vpop.permute.xlu0 %708
      %v711 = vadd.f32 %v701, %v709
      %v712 = vtanh.pop %v711
      %714 = vrot.lane.b32.xlu0 %v712, 32
      %v715 = vpop.permute.xlu0 %714
      %v717 = vmul.f32 %v699, %v715
      %v718 = vstv %s615
      %vm719 = vcmp.eq.s32.totalorder %v395, %v718
      %v720 = vlaneseq
      %v721 = vshrl.u32 %v720, 7
      %v722 = vsub.s32 0, %v721
      %v723 = vrot.slane %v717, %v722
      %v724 = vsel %vm719, %v723, %v614
      %s725 = scalar_select %p304, 3, 4
      %s726 = scalar_lea.vmem [#allocation2], %s725
      %v727 = vld [vmem:[%s726] sm:$0x1]
      %729 = vrot.lane.b32.xlu0 %v717, 64
      %v730 = vpop.permute.xlu0 %729
      %v731 = vsel %vm399, %v730, 0
      %733 = vmatprep.subr.mxu0 0.0
      %734 = vmatpush1.msra.mxu0 %v390
      %735 = vmatprep.subr.mxu0 0.0
      %736 = vmatpush1.msra.mxu0 %v391
      %737 = vmatprep.subr.mxu0 0.0
      %738 = vmatpush1.msra.mxu0 %v392
      %739 = vmatprep.subr.mxu0 0.0
      %740 = vmatpush1.msra.mxu0 %v393
      %741 = vmatprep.subr.mxu0 0.0
      %742 = vmatpush1.msra.mxu0 0.0
      %743 = vmatprep.subr.mxu0 0.0
      %744 = vmatpush1.msra.mxu0 0.0
      %745 = vmatprep.subr.mxu0 0.0
      %746 = vmatpush1.msra.mxu0 0.0
      %747 = vmatprep.subr.mxu0 0.0
      %748 = vmatpush1.msra.mxu0 0.0
      %749 = vmatprep.subr.mxu0 0.0
      %750 = vmatpush1.msra.mxu0 0.0
      %751 = vmatprep.subr.mxu0 0.0
      %752 = vmatpush1.msra.mxu0 0.0
      %753 = vmatprep.subr.mxu0 0.0
      %754 = vmatpush1.msra.mxu0 0.0
      %755 = vmatprep.subr.mxu0 0.0
      %756 = vmatpush1.msra.mxu0 0.0
      %757 = vmatprep.subr.mxu0 0.0
      %758 = vmatpush1.msra.mxu0 0.0
      %759 = vmatprep.subr.mxu0 0.0
      %760 = vmatpush1.msra.mxu0 0.0
      %761 = vmatprep.subr.mxu0 0.0
      %762 = vmatpush1.msra.mxu0 0.0
      %763 = vmatprep.subr.mxu0 0.0
      %764 = vmatpush1.msra.mxu0 0.0
      %765 = vmatprep.subr.mxu0 0.0
      %766 = vmatpush1.msra.mxu0 0.0
      %767 = vmatprep.subr.mxu0 0.0
      %768 = vmatpush1.msra.mxu0 0.0
      %769 = vmatprep.subr.mxu0 0.0
      %770 = vmatpush1.msra.mxu0 0.0
      %771 = vmatprep.subr.mxu0 0.0
      %772 = vmatpush1.msra.mxu0 0.0
      %773 = vmatprep.subr.mxu0 0.0
      %774 = vmatpush1.msra.mxu0 0.0
      %775 = vmatprep.subr.mxu0 0.0
      %776 = vmatpush1.msra.mxu0 0.0
      %777 = vmatprep.subr.mxu0 0.0
      %778 = vmatpush1.msra.mxu0 0.0
      %779 = vmatprep.subr.mxu0 0.0
      %780 = vmatpush1.msra.mxu0 0.0
      %781 = vmatprep.subr.mxu0 0.0
      %782 = vmatpush1.msra.mxu0 0.0
      %783 = vmatprep.subr.mxu0 0.0
      %784 = vmatpush1.msra.mxu0 0.0
      %785 = vmatprep.subr.mxu0 0.0
      %786 = vmatpush1.msra.mxu0 0.0
      %787 = vmatprep.subr.mxu0 0.0
      %788 = vmatpush1.msra.mxu0 0.0
      %789 = vmatprep.subr.mxu0 0.0
      %790 = vmatpush1.msra.mxu0 0.0
      %791 = vmatprep.subr.mxu0 0.0
      %792 = vmatpush1.msra.mxu0 0.0
      %793 = vmatprep.subr.mxu0 0.0
      %794 = vmatpush1.msra.mxu0 0.0
      %795 = vmatprep.subr.mxu0 0.0
      %796 = vmatpush1.msra.mxu0 0.0
      %797 = vmatprep.mubr.f32.mxu0 0.0
      %798 = vmatmul.mubr.f32.gmra.mrb[0].mxu0 %v731
      %v799 = vpop.f32.mrb[0].mxu0
      %v800 = vadd.f32 0.0, %v799
      %v801 = vpop.f32.mrb[0].mxu0
      %802 = vdwg.mxu0
      %v803 = vadd.f32 %v727, %v800
      %v804 = vxor.u32 %v803, 2147483648
      %v805 = vmul.f32 %v804, 1.442695
      %v806 = vpow.pop %v805
      %v807 = vadd.f32 %v806, 1.0
      %v808 = vrcp.pop %v807
      %v809 = vmul.f32 1.0, %v808
      %v810 = vtanh.pop %v803
      %v811 = vmul.f32 %v809, %v711
      %813 = vrot.lane.b32.xlu0 %v810, 32
      %v814 = vpop.permute.xlu0 %813
      %v816 = vmul.f32 %v809, %v814
      %818 = vrot.lane.b32.xlu0 %v816, 32
      %v819 = vpop.permute.xlu0 %818
      %v821 = vadd.f32 %v811, %v819
      %v822 = vtanh.pop %v821
      %824 = vrot.lane.b32.xlu0 %v822, 32
      %v825 = vpop.permute.xlu0 %824
      %v827 = vmul.f32 %v809, %v825
      %v828 = vstv %s725
      %vm829 = vcmp.eq.s32.totalorder %v395, %v828
      %v830 = vlaneseq
      %v831 = vshrl.u32 %v830, 7
      %v832 = vsub.s32 0, %v831
      %v833 = vrot.slane %v827, %v832
      %v834 = vsel %vm829, %v833, %v724
      %s835 = scalar_select %p304, 4, 3
      %s836 = scalar_lea.vmem [#allocation2], %s835
      %v837 = vld [vmem:[%s836] sm:$0x1]
      %839 = vrot.lane.b32.xlu0 %v827, 64
      %v840 = vpop.permute.xlu0 %839
      %v841 = vsel %vm399, %v840, 0
      %843 = vmatprep.subr.mxu0 0.0
      %844 = vmatpush1.msra.mxu0 %v390
      %845 = vmatprep.subr.mxu0 0.0
      %846 = vmatpush1.msra.mxu0 %v391
      %847 = vmatprep.subr.mxu0 0.0
      %848 = vmatpush1.msra.mxu0 %v392
      %849 = vmatprep.subr.mxu0 0.0
      %850 = vmatpush1.msra.mxu0 %v393
      %851 = vmatprep.subr.mxu0 0.0
      %852 = vmatpush1.msra.mxu0 0.0
      %853 = vmatprep.subr.mxu0 0.0
      %854 = vmatpush1.msra.mxu0 0.0
      %855 = vmatprep.subr.mxu0 0.0
      %856 = vmatpush1.msra.mxu0 0.0
      %857 = vmatprep.subr.mxu0 0.0
      %858 = vmatpush1.msra.mxu0 0.0
      %859 = vmatprep.subr.mxu0 0.0
      %860 = vmatpush1.msra.mxu0 0.0
      %861 = vmatprep.subr.mxu0 0.0
      %862 = vmatpush1.msra.mxu0 0.0
      %863 = vmatprep.subr.mxu0 0.0
      %864 = vmatpush1.msra.mxu0 0.0
      %865 = vmatprep.subr.mxu0 0.0
      %866 = vmatpush1.msra.mxu0 0.0
      %867 = vmatprep.subr.mxu0 0.0
      %868 = vmatpush1.msra.mxu0 0.0
      %869 = vmatprep.subr.mxu0 0.0
      %870 = vmatpush1.msra.mxu0 0.0
      %871 = vmatprep.subr.mxu0 0.0
      %872 = vmatpush1.msra.mxu0 0.0
      %873 = vmatprep.subr.mxu0 0.0
      %874 = vmatpush1.msra.mxu0 0.0
      %875 = vmatprep.subr.mxu0 0.0
      %876 = vmatpush1.msra.mxu0 0.0
      %877 = vmatprep.subr.mxu0 0.0
      %878 = vmatpush1.msra.mxu0 0.0
      %879 = vmatprep.subr.mxu0 0.0
      %880 = vmatpush1.msra.mxu0 0.0
      %881 = vmatprep.subr.mxu0 0.0
      %882 = vmatpush1.msra.mxu0 0.0
      %883 = vmatprep.subr.mxu0 0.0
      %884 = vmatpush1.msra.mxu0 0.0
      %885 = vmatprep.subr.mxu0 0.0
      %886 = vmatpush1.msra.mxu0 0.0
      %887 = vmatprep.subr.mxu0 0.0
      %888 = vmatpush1.msra.mxu0 0.0
      %889 = vmatprep.subr.mxu0 0.0
      %890 = vmatpush1.msra.mxu0 0.0
      %891 = vmatprep.subr.mxu0 0.0
      %892 = vmatpush1.msra.mxu0 0.0
      %893 = vmatprep.subr.mxu0 0.0
      %894 = vmatpush1.msra.mxu0 0.0
      %895 = vmatprep.subr.mxu0 0.0
      %896 = vmatpush1.msra.mxu0 0.0
      %897 = vmatprep.subr.mxu0 0.0
      %898 = vmatpush1.msra.mxu0 0.0
      %899 = vmatprep.subr.mxu0 0.0
      %900 = vmatpush1.msra.mxu0 0.0
      %901 = vmatprep.subr.mxu0 0.0
      %902 = vmatpush1.msra.mxu0 0.0
      %903 = vmatprep.subr.mxu0 0.0
      %904 = vmatpush1.msra.mxu0 0.0
      %905 = vmatprep.subr.mxu0 0.0
      %906 = vmatpush1.msra.mxu0 0.0
      %907 = vmatprep.mubr.f32.mxu0 0.0
      %908 = vmatmul.mubr.f32.gmra.mrb[0].mxu0 %v841
      %v909 = vpop.f32.mrb[0].mxu0
      %v910 = vadd.f32 0.0, %v909
      %v911 = vpop.f32.mrb[0].mxu0
      %912 = vdwg.mxu0
      %v913 = vadd.f32 %v837, %v910
      %v914 = vxor.u32 %v913, 2147483648
      %v915 = vmul.f32 %v914, 1.442695
      %v916 = vpow.pop %v915
      %v917 = vadd.f32 %v916, 1.0
      %v918 = vrcp.pop %v917
      %v919 = vmul.f32 1.0, %v918
      %v920 = vtanh.pop %v913
      %v921 = vmul.f32 %v919, %v821
      %923 = vrot.lane.b32.xlu0 %v920, 32
      %v924 = vpop.permute.xlu0 %923
      %v926 = vmul.f32 %v919, %v924
      %928 = vrot.lane.b32.xlu0 %v926, 32
      %v929 = vpop.permute.xlu0 %928
      %v931 = vadd.f32 %v921, %v929
      %v932 = vtanh.pop %v931
      %934 = vrot.lane.b32.xlu0 %v932, 32
      %v935 = vpop.permute.xlu0 %934
      %v937 = vmul.f32 %v919, %v935
      %v938 = vstv %s835
      %vm939 = vcmp.eq.s32.totalorder %v395, %v938
      %v940 = vlaneseq
      %v941 = vshrl.u32 %v940, 7
      %v942 = vsub.s32 0, %v941
      %v943 = vrot.slane %v937, %v942
      %v944 = vsel %vm939, %v943, %v834
      %s945 = scalar_select %p304, 5, 2
      %s946 = scalar_lea.vmem [#allocation2], %s945
      %v947 = vld [vmem:[%s946] sm:$0x1]
      %949 = vrot.lane.b32.xlu0 %v937, 64
      %v950 = vpop.permute.xlu0 %949
      %v951 = vsel %vm399, %v950, 0
      %953 = vmatprep.subr.mxu0 0.0
      %954 = vmatpush1.msra.mxu0 %v390
      %955 = vmatprep.subr.mxu0 0.0
      %956 = vmatpush1.msra.mxu0 %v391
      %957 = vmatprep.subr.mxu0 0.0
      %958 = vmatpush1.msra.mxu0 %v392
      %959 = vmatprep.subr.mxu0 0.0
      %960 = vmatpush1.msra.mxu0 %v393
      %961 = vmatprep.subr.mxu0 0.0
      %962 = vmatpush1.msra.mxu0 0.0
      %963 = vmatprep.subr.mxu0 0.0
      %964 = vmatpush1.msra.mxu0 0.0
      %965 = vmatprep.subr.mxu0 0.0
      %966 = vmatpush1.msra.mxu0 0.0
      %967 = vmatprep.subr.mxu0 0.0
      %968 = vmatpush1.msra.mxu0 0.0
      %969 = vmatprep.subr.mxu0 0.0
      %970 = vmatpush1.msra.mxu0 0.0
      %971 = vmatprep.subr.mxu0 0.0
      %972 = vmatpush1.msra.mxu0 0.0
      %973 = vmatprep.subr.mxu0 0.0
      %974 = vmatpush1.msra.mxu0 0.0
      %975 = vmatprep.subr.mxu0 0.0
      %976 = vmatpush1.msra.mxu0 0.0
      %977 = vmatprep.subr.mxu0 0.0
      %978 = vmatpush1.msra.mxu0 0.0
      %979 = vmatprep.subr.mxu0 0.0
      %980 = vmatpush1.msra.mxu0 0.0
      %981 = vmatprep.subr.mxu0 0.0
      %982 = vmatpush1.msra.mxu0 0.0
      %983 = vmatprep.subr.mxu0 0.0
      %984 = vmatpush1.msra.mxu0 0.0
      %985 = vmatprep.subr.mxu0 0.0
      %986 = vmatpush1.msra.mxu0 0.0
      %987 = vmatprep.subr.mxu0 0.0
      %988 = vmatpush1.msra.mxu0 0.0
      %989 = vmatprep.subr.mxu0 0.0
      %990 = vmatpush1.msra.mxu0 0.0
      %991 = vmatprep.subr.mxu0 0.0
      %992 = vmatpush1.msra.mxu0 0.0
      %993 = vmatprep.subr.mxu0 0.0
      %994 = vmatpush1.msra.mxu0 0.0
      %995 = vmatprep.subr.mxu0 0.0
      %996 = vmatpush1.msra.mxu0 0.0
      %997 = vmatprep.subr.mxu0 0.0
      %998 = vmatpush1.msra.mxu0 0.0
      %999 = vmatprep.subr.mxu0 0.0
      %1000 = vmatpush1.msra.mxu0 0.0
      %1001 = vmatprep.subr.mxu0 0.0
      %1002 = vmatpush1.msra.mxu0 0.0
      %1003 = vmatprep.subr.mxu0 0.0
      %1004 = vmatpush1.msra.mxu0 0.0
      %1005 = vmatprep.subr.mxu0 0.0
      %1006 = vmatpush1.msra.mxu0 0.0
      %1007 = vmatprep.subr.mxu0 0.0
      %1008 = vmatpush1.msra.mxu0 0.0
      %1009 = vmatprep.subr.mxu0 0.0
      %1010 = vmatpush1.msra.mxu0 0.0
      %1011 = vmatprep.subr.mxu0 0.0
      %1012 = vmatpush1.msra.mxu0 0.0
      %1013 = vmatprep.subr.mxu0 0.0
      %1014 = vmatpush1.msra.mxu0 0.0
      %1015 = vmatprep.subr.mxu0 0.0
      %1016 = vmatpush1.msra.mxu0 0.0
      %1017 = vmatprep.mubr.f32.mxu0 0.0
      %1018 = vmatmul.mubr.f32.gmra.mrb[0].mxu0 %v951
      %v1019 = vpop.f32.mrb[0].mxu0
      %v1020 = vadd.f32 0.0, %v1019
      %v1021 = vpop.f32.mrb[0].mxu0
      %1022 = vdwg.mxu0
      %v1023 = vadd.f32 %v947, %v1020
      %v1024 = vxor.u32 %v1023, 2147483648
      %v1025 = vmul.f32 %v1024, 1.442695
      %v1026 = vpow.pop %v1025
      %v1027 = vadd.f32 %v1026, 1.0
      %v1028 = vrcp.pop %v1027
      %v1029 = vmul.f32 1.0, %v1028
      %v1030 = vtanh.pop %v1023
      %v1031 = vmul.f32 %v1029, %v931
      %1033 = vrot.lane.b32.xlu0 %v1030, 32
      %v1034 = vpop.permute.xlu0 %1033
      %v1036 = vmul.f32 %v1029, %v1034
      %1038 = vrot.lane.b32.xlu0 %v1036, 32
      %v1039 = vpop.permute.xlu0 %1038
      %v1041 = vadd.f32 %v1031, %v1039
      %v1042 = vtanh.pop %v1041
      %1044 = vrot.lane.b32.xlu0 %v1042, 32
      %v1045 = vpop.permute.xlu0 %1044
      %v1047 = vmul.f32 %v1029, %v1045
      %v1048 = vstv %s945
      %vm1049 = vcmp.eq.s32.totalorder %v395, %v1048
      %v1050 = vlaneseq
      %v1051 = vshrl.u32 %v1050, 7
      %v1052 = vsub.s32 0, %v1051
      %v1053 = vrot.slane %v1047, %v1052
      %v1054 = vsel %vm1049, %v1053, %v944
      %s1055 = scalar_select %p304, 6, 1
      %s1056 = scalar_lea.vmem [#allocation2], %s1055
      %v1057 = vld [vmem:[%s1056] sm:$0x1]
      %1059 = vrot.lane.b32.xlu0 %v1047, 64
      %v1060 = vpop.permute.xlu0 %1059
      %v1061 = vsel %vm399, %v1060, 0
      %1063 = vmatprep.subr.mxu0 0.0
      %1064 = vmatpush1.msra.mxu0 %v390
      %1065 = vmatprep.subr.mxu0 0.0
      %1066 = vmatpush1.msra.mxu0 %v391
      %1067 = vmatprep.subr.mxu0 0.0
      %1068 = vmatpush1.msra.mxu0 %v392
      %1069 = vmatprep.subr.mxu0 0.0
      %1070 = vmatpush1.msra.mxu0 %v393
      %1071 = vmatprep.subr.mxu0 0.0
      %1072 = vmatpush1.msra.mxu0 0.0
      %1073 = vmatprep.subr.mxu0 0.0
      %1074 = vmatpush1.msra.mxu0 0.0
      %1075 = vmatprep.subr.mxu0 0.0
      %1076 = vmatpush1.msra.mxu0 0.0
      %1077 = vmatprep.subr.mxu0 0.0
      %1078 = vmatpush1.msra.mxu0 0.0
      %1079 = vmatprep.subr.mxu0 0.0
      %1080 = vmatpush1.msra.mxu0 0.0
      %1081 = vmatprep.subr.mxu0 0.0
      %1082 = vmatpush1.msra.mxu0 0.0
      %1083 = vmatprep.subr.mxu0 0.0
      %1084 = vmatpush1.msra.mxu0 0.0
      %1085 = vmatprep.subr.mxu0 0.0
      %1086 = vmatpush1.msra.mxu0 0.0
      %1087 = vmatprep.subr.mxu0 0.0
      %1088 = vmatpush1.msra.mxu0 0.0
      %1089 = vmatprep.subr.mxu0 0.0
      %1090 = vmatpush1.msra.mxu0 0.0
      %1091 = vmatprep.subr.mxu0 0.0
      %1092 = vmatpush1.msra.mxu0 0.0
      %1093 = vmatprep.subr.mxu0 0.0
      %1094 = vmatpush1.msra.mxu0 0.0
      %1095 = vmatprep.subr.mxu0 0.0
      %1096 = vmatpush1.msra.mxu0 0.0
      %1097 = vmatprep.subr.mxu0 0.0
      %1098 = vmatpush1.msra.mxu0 0.0
      %1099 = vmatprep.subr.mxu0 0.0
      %1100 = vmatpush1.msra.mxu0 0.0
      %1101 = vmatprep.subr.mxu0 0.0
      %1102 = vmatpush1.msra.mxu0 0.0
      %1103 = vmatprep.subr.mxu0 0.0
      %1104 = vmatpush1.msra.mxu0 0.0
      %1105 = vmatprep.subr.mxu0 0.0
      %1106 = vmatpush1.msra.mxu0 0.0
      %1107 = vmatprep.subr.mxu0 0.0
      %1108 = vmatpush1.msra.mxu0 0.0
      %1109 = vmatprep.subr.mxu0 0.0
      %1110 = vmatpush1.msra.mxu0 0.0
      %1111 = vmatprep.subr.mxu0 0.0
      %1112 = vmatpush1.msra.mxu0 0.0
      %1113 = vmatprep.subr.mxu0 0.0
      %1114 = vmatpush1.msra.mxu0 0.0
      %1115 = vmatprep.subr.mxu0 0.0
      %1116 = vmatpush1.msra.mxu0 0.0
      %1117 = vmatprep.subr.mxu0 0.0
      %1118 = vmatpush1.msra.mxu0 0.0
      %1119 = vmatprep.subr.mxu0 0.0
      %1120 = vmatpush1.msra.mxu0 0.0
      %1121 = vmatprep.subr.mxu0 0.0
      %1122 = vmatpush1.msra.mxu0 0.0
      %1123 = vmatprep.subr.mxu0 0.0
      %1124 = vmatpush1.msra.mxu0 0.0
      %1125 = vmatprep.subr.mxu0 0.0
      %1126 = vmatpush1.msra.mxu0 0.0
      %1127 = vmatprep.mubr.f32.mxu0 0.0
      %1128 = vmatmul.mubr.f32.gmra.mrb[0].mxu0 %v1061
      %v1129 = vpop.f32.mrb[0].mxu0
      %v1130 = vadd.f32 0.0, %v1129
      %v1131 = vpop.f32.mrb[0].mxu0
      %1132 = vdwg.mxu0
      %v1133 = vadd.f32 %v1057, %v1130
      %v1134 = vxor.u32 %v1133, 2147483648
      %v1135 = vmul.f32 %v1134, 1.442695
      %v1136 = vpow.pop %v1135
      %v1137 = vadd.f32 %v1136, 1.0
      %v1138 = vrcp.pop %v1137
      %v1139 = vmul.f32 1.0, %v1138
      %v1140 = vtanh.pop %v1133
      %v1141 = vmul.f32 %v1139, %v1041
      %1143 = vrot.lane.b32.xlu0 %v1140, 32
      %v1144 = vpop.permute.xlu0 %1143
      %v1146 = vmul.f32 %v1139, %v1144
      %1148 = vrot.lane.b32.xlu0 %v1146, 32
      %v1149 = vpop.permute.xlu0 %1148
      %v1151 = vadd.f32 %v1141, %v1149
      %v1152 = vtanh.pop %v1151
      %1154 = vrot.lane.b32.xlu0 %v1152, 32
      %v1155 = vpop.permute.xlu0 %1154
      %v1157 = vmul.f32 %v1139, %v1155
      %v1158 = vstv %s1055
      %vm1159 = vcmp.eq.s32.totalorder %v395, %v1158
      %v1160 = vlaneseq
      %v1161 = vshrl.u32 %v1160, 7
      %v1162 = vsub.s32 0, %v1161
      %v1163 = vrot.slane %v1157, %v1162
      %v1164 = vsel %vm1159, %v1163, %v1054
      %s1165 = scalar_select %p304, 7, 0
      %s1166 = scalar_lea.vmem [#allocation2], %s1165
      %v1167 = vld [vmem:[%s1166] sm:$0x1]
      %1169 = vrot.lane.b32.xlu0 %v1157, 64
      %v1170 = vpop.permute.xlu0 %1169
      %v1171 = vsel %vm399, %v1170, 0
      %1173 = vmatprep.subr.mxu0 0.0
      %1174 = vmatpush1.msra.mxu0 %v390
      %1175 = vmatprep.subr.mxu0 0.0
      %1176 = vmatpush1.msra.mxu0 %v391
      %1177 = vmatprep.subr.mxu0 0.0
      %1178 = vmatpush1.msra.mxu0 %v392
      %1179 = vmatprep.subr.mxu0 0.0
      %1180 = vmatpush1.msra.mxu0 %v393
      %1181 = vmatprep.subr.mxu0 0.0
      %1182 = vmatpush1.msra.mxu0 0.0
      %1183 = vmatprep.subr.mxu0 0.0
      %1184 = vmatpush1.msra.mxu0 0.0
      %1185 = vmatprep.subr.mxu0 0.0
      %1186 = vmatpush1.msra.mxu0 0.0
      %1187 = vmatprep.subr.mxu0 0.0
      %1188 = vmatpush1.msra.mxu0 0.0
      %1189 = vmatprep.subr.mxu0 0.0
      %1190 = vmatpush1.msra.mxu0 0.0
      %1191 = vmatprep.subr.mxu0 0.0
      %1192 = vmatpush1.msra.mxu0 0.0
      %1193 = vmatprep.subr.mxu0 0.0
      %1194 = vmatpush1.msra.mxu0 0.0
      %1195 = vmatprep.subr.mxu0 0.0
      %1196 = vmatpush1.msra.mxu0 0.0
      %1197 = vmatprep.subr.mxu0 0.0
      %1198 = vmatpush1.msra.mxu0 0.0
      %1199 = vmatprep.subr.mxu0 0.0
      %1200 = vmatpush1.msra.mxu0 0.0
      %1201 = vmatprep.subr.mxu0 0.0
      %1202 = vmatpush1.msra.mxu0 0.0
      %1203 = vmatprep.subr.mxu0 0.0
      %1204 = vmatpush1.msra.mxu0 0.0
      %1205 = vmatprep.subr.mxu0 0.0
      %1206 = vmatpush1.msra.mxu0 0.0
      %1207 = vmatprep.subr.mxu0 0.0
      %1208 = vmatpush1.msra.mxu0 0.0
      %1209 = vmatprep.subr.mxu0 0.0
      %1210 = vmatpush1.msra.mxu0 0.0
      %1211 = vmatprep.subr.mxu0 0.0
      %1212 = vmatpush1.msra.mxu0 0.0
      %1213 = vmatprep.subr.mxu0 0.0
      %1214 = vmatpush1.msra.mxu0 0.0
      %1215 = vmatprep.subr.mxu0 0.0
      %1216 = vmatpush1.msra.mxu0 0.0
      %1217 = vmatprep.subr.mxu0 0.0
      %1218 = vmatpush1.msra.mxu0 0.0
      %1219 = vmatprep.subr.mxu0 0.0
      %1220 = vmatpush1.msra.mxu0 0.0
      %1221 = vmatprep.subr.mxu0 0.0
      %1222 = vmatpush1.msra.mxu0 0.0
      %1223 = vmatprep.subr.mxu0 0.0
      %1224 = vmatpush1.msra.mxu0 0.0
      %1225 = vmatprep.subr.mxu0 0.0
      %1226 = vmatpush1.msra.mxu0 0.0
      %1227 = vmatprep.subr.mxu0 0.0
      %1228 = vmatpush1.msra.mxu0 0.0
      %1229 = vmatprep.subr.mxu0 0.0
      %1230 = vmatpush1.msra.mxu0 0.0
      %1231 = vmatprep.subr.mxu0 0.0
      %1232 = vmatpush1.msra.mxu0 0.0
      %1233 = vmatprep.subr.mxu0 0.0
      %1234 = vmatpush1.msra.mxu0 0.0
      %1235 = vmatprep.subr.mxu0 0.0
      %1236 = vmatpush1.msra.mxu0 0.0
      %1237 = vmatprep.mubr.f32.mxu0 0.0
      %1238 = vmatmul.mubr.f32.gmra.mrb[0].mxu0 %v1171
      %v1239 = vpop.f32.mrb[0].mxu0
      %v1240 = vadd.f32 0.0, %v1239
      %v1241 = vpop.f32.mrb[0].mxu0
      %1242 = vdwg.mxu0
      %v1243 = vadd.f32 %v1167, %v1240
      %v1244 = vxor.u32 %v1243, 2147483648
      %v1245 = vmul.f32 %v1244, 1.442695
      %v1246 = vpow.pop %v1245
      %v1247 = vadd.f32 %v1246, 1.0
      %v1248 = vrcp.pop %v1247
      %v1249 = vmul.f32 1.0, %v1248
      %v1250 = vtanh.pop %v1243
      %v1251 = vmul.f32 %v1249, %v1151
      %1253 = vrot.lane.b32.xlu0 %v1250, 32
      %v1254 = vpop.permute.xlu0 %1253
      %v1256 = vmul.f32 %v1249, %v1254
      %1258 = vrot.lane.b32.xlu0 %v1256, 32
      %v1259 = vpop.permute.xlu0 %1258
      %v1261 = vadd.f32 %v1251, %v1259
      %v1262 = vtanh.pop %v1261
      %1264 = vrot.lane.b32.xlu0 %v1262, 32
      %v1265 = vpop.permute.xlu0 %1264
      %v1267 = vmul.f32 %v1249, %v1265
      %v1268 = vstv %s1165
      %vm1269 = vcmp.eq.s32.totalorder %v395, %v1268
      %v1270 = vlaneseq
      %v1271 = vshrl.u32 %v1270, 7
      %v1272 = vsub.s32 0, %v1271
      %v1273 = vrot.slane %v1267, %v1272
      %v1274 = vsel %vm1269, %v1273, %v1164
      %v1275 = vld [vmem:[%s299] sm:$0xff]
      %v1276 = vld [vmem:[%s299 + $0x8] sm:$0xff]
      %v1277 = vld [vmem:[%s299 + $0x10] sm:$0xff]
      %v1278 = vld [vmem:[%s299 + $0x18] sm:$0xff]
      %1280 = vrot.lane.b32.xlu0 %v1274, 64
      %v1281 = vpop.permute.xlu0 %1280
      %v1282 = vsel %vm399, %v1281, 0
      %1284 = vmatprep.subr.mxu0 0.0
      %1285 = vmatpush1.msra.mxu0 %v1275
      %1286 = vmatprep.subr.mxu0 0.0
      %1287 = vmatpush1.msra.mxu0 %v1276
      %1288 = vmatprep.subr.mxu0 0.0
      %1289 = vmatpush1.msra.mxu0 %v1277
      %1290 = vmatprep.subr.mxu0 0.0
      %1291 = vmatpush1.msra.mxu0 %v1278
      %1292 = vmatprep.subr.mxu0 0.0
      %1293 = vmatpush1.msra.mxu0 0.0
      %1294 = vmatprep.subr.mxu0 0.0
      %1295 = vmatpush1.msra.mxu0 0.0
      %1296 = vmatprep.subr.mxu0 0.0
      %1297 = vmatpush1.msra.mxu0 0.0
      %1298 = vmatprep.subr.mxu0 0.0
      %1299 = vmatpush1.msra.mxu0 0.0
      %1300 = vmatprep.subr.mxu0 0.0
      %1301 = vmatpush1.msra.mxu0 0.0
      %1302 = vmatprep.subr.mxu0 0.0
      %1303 = vmatpush1.msra.mxu0 0.0
      %1304 = vmatprep.subr.mxu0 0.0
      %1305 = vmatpush1.msra.mxu0 0.0
      %1306 = vmatprep.subr.mxu0 0.0
      %1307 = vmatpush1.msra.mxu0 0.0
      %1308 = vmatprep.subr.mxu0 0.0
      %1309 = vmatpush1.msra.mxu0 0.0
      %1310 = vmatprep.subr.mxu0 0.0
      %1311 = vmatpush1.msra.mxu0 0.0
      %1312 = vmatprep.subr.mxu0 0.0
      %1313 = vmatpush1.msra.mxu0 0.0
      %1314 = vmatprep.subr.mxu0 0.0
      %1315 = vmatpush1.msra.mxu0 0.0
      %1316 = vmatprep.subr.mxu0 0.0
      %1317 = vmatpush1.msra.mxu0 0.0
      %1318 = vmatprep.subr.mxu0 0.0
      %1319 = vmatpush1.msra.mxu0 0.0
      %1320 = vmatprep.subr.mxu0 0.0
      %1321 = vmatpush1.msra.mxu0 0.0
      %1322 = vmatprep.subr.mxu0 0.0
      %1323 = vmatpush1.msra.mxu0 0.0
      %1324 = vmatprep.subr.mxu0 0.0
      %1325 = vmatpush1.msra.mxu0 0.0
      %1326 = vmatprep.subr.mxu0 0.0
      %1327 = vmatpush1.msra.mxu0 0.0
      %1328 = vmatprep.subr.mxu0 0.0
      %1329 = vmatpush1.msra.mxu0 0.0
      %1330 = vmatprep.subr.mxu0 0.0
      %1331 = vmatpush1.msra.mxu0 0.0
      %1332 = vmatprep.subr.mxu0 0.0
      %1333 = vmatpush1.msra.mxu0 0.0
      %1334 = vmatprep.subr.mxu0 0.0
      %1335 = vmatpush1.msra.mxu0 0.0
      %1336 = vmatprep.subr.mxu0 0.0
      %1337 = vmatpush1.msra.mxu0 0.0
      %1338 = vmatprep.subr.mxu0 0.0
      %1339 = vmatpush1.msra.mxu0 0.0
      %1340 = vmatprep.subr.mxu0 0.0
      %1341 = vmatpush1.msra.mxu0 0.0
      %1342 = vmatprep.subr.mxu0 0.0
      %1343 = vmatpush1.msra.mxu0 0.0
      %1344 = vmatprep.subr.mxu0 0.0
      %1345 = vmatpush1.msra.mxu0 0.0
      %1346 = vmatprep.subr.mxu0 0.0
      %1347 = vmatpush1.msra.mxu0 0.0
      %1348 = vmatprep.mubr.f32.mxu0 0.0
      %1349 = vmatmul.mubr.f32.gmra.mrb[0].mxu0 %v1282
      %v1350 = vpop.f32.mrb[0].mxu0
      %v1351 = vadd.f32 0.0, %v1350
      %v1352 = vpop.f32.mrb[0].mxu0
      %1353 = vdwg.mxu0
      // Predicated region
      $region45: #{ball_analyzer_forward.1} parent=43 // pred_check
        %p1354 = pneg %p304
      $region46: #{ball_analyzer_forward.1} parent=43 // pred_check_branch
        %1356 = sbr.rel (%p1354) target = $region48
      $region47: #{ball_analyzer_forward.1} parent=43 // pred_region
        %v1357 = vld [vmem:[%s5] sm:$0x1]
        %v1359 = vlaneseq
        %v1360 = vshrl.u32 %v1359, 7
        %v1361 = vsub.s32 0, %v1360
        %v1362 = vrot.slane %v1357, %v1361
        %v1364 = vadd.f32 %v1351, %v1362
        %vm1365 = vcmask 31744
        %1366 = vst.msk [vmem:[%s303] sm:$0xff] %vm1365, %v1364
      $region48: #{ball_analyzer_forward.1} parent=43 // pred_fallthru
        _
      %p1367 = scmp.ne.s32.totalorder %s17, 0
      // Predicated region
      $region49: #{ball_analyzer_forward.1} parent=43 // pred_check
        %p1368 = pneg %p1367
      $region50: #{ball_analyzer_forward.1} parent=43 // pred_check_branch
        %1370 = sbr.rel (%p1368) target = $region52
      $region51: #{ball_analyzer_forward.1} parent=43 // pred_region
        %vm1371 = vcmask 31744
        %1372 = vst.msk [vmem:[%s303] sm:$0xff] %vm1371, %v1351
      $region52: #{ball_analyzer_forward.1} parent=43 // pred_fallthru
        _
      %p1373 = scmp.lt.s32.totalorder %s17, 1
      %s1374 = scalar_select %p1373, %s17, 1
      %s1375 = smul.addr %s1374, 8
      %s1376 = scalar_lea.vmem %s6, %s1375
      // Predicated region
      $region53: #{ball_analyzer_forward.1} parent=43 // pred_check
        %p1377 = pneg %p181
      $region54: #{ball_analyzer_forward.1} parent=43 // pred_check_branch
        %1379 = sbr.rel (%p1377) target = $region56
      $region55: #{ball_analyzer_forward.1} parent=43 // pred_region
        _
      $region56: #{ball_analyzer_forward.1} parent=43 // pred_fallthru
        _
    $region44: #{ball_analyzer_forward.1} parent=5 // pred_fallthru
      _
    %p1380 = scmp.le.s32.totalorder 2, %s12
    // Predicated region
    $region57: #{ball_analyzer_forward.1} parent=5 // pred_check
      %p1381 = pneg %p1380
    $region58: #{ball_analyzer_forward.1} parent=5 // pred_check_branch
      %1383 = sbr.rel (%p1381) target = $region60
    $region59: #{ball_analyzer_forward.1} parent=5 // pred_region
      %s1384 = ssub.s32 %s12, 2
      // Predicated region
      $region61: #{ball_analyzer_forward.1} parent=59 // pred_check
        %p1385 = pneg %p187
      $region62: #{ball_analyzer_forward.1} parent=59 // pred_check_branch
        %1387 = sbr.rel (%p1385) target = $region64
      $region63: #{ball_analyzer_forward.1} parent=59 // pred_region
        %p1388 = scmp.lt.s32.totalorder %s18, 1
        %s1389 = scalar_select %p1388, %s18, 1
        %s1390 = smul.addr %s1389, 8
        %s1391 = scalar_lea.vmem %s6, %s1390
      $region64: #{ball_analyzer_forward.1} parent=59 // pred_fallthru
        _
    $region60: #{ball_analyzer_forward.1} parent=5 // pred_fallthru
      _
  $region6: #{ball_analyzer_forward.1} parent=0 // loop_footer
    %s16 = sadd.s32 1, %s12
  $region7: #{ball_analyzer_forward.1} parent=0 // loop_footer_branch
    %11 = sbr.rel target = $region3
  $region8: #{ball_analyzer_forward.1} parent=0 // loop_exit
    _

</llo_original>
